<compile_context>
chip_gen: v5e
topology: v5e:2x2
jax: 0.10.0
libtpu: 0.0.40
codegen_flags: <defaults>
</compile_context>

<pallas_src>
import functools

import jax
import jax.numpy as jnp
from jax import lax
from jax.experimental import pallas as pl
from jax.experimental.pallas import tpu as pltpu


def _round_up(x, m):
    return ((x + m - 1) // m) * m


def mha_kernel(x_ref, wqkv_ref, wo_ref, bo_ref, o_ref, merged_ref, *,
               num_heads, head_dim, head_dim_pad, q_block, compute_dtype):
    # x_ref: (Nb, S, E) -- Nb batch rows per grid step.
    Nb, S, E = x_ref.shape
    Dh, Dp = head_dim, head_dim_pad
    rows = Nb * S

    # Collapse leading dims (layout no-op when S % 8 == 0): one tall matmul
    # feeds the MXU for all rows of this block.
    x = x_ref[...].reshape(rows, E).astype(compute_dtype)

    # Fused Q/K/V projection.  wqkv is pre-transposed to (E, 3*H*Dp), pre-cast
    # to compute_dtype, head_dim zero-padded to Dp, and the 1/sqrt(head_dim)
    # scale is already folded into the Q columns.
    qkv = jnp.dot(x, wqkv_ref[...], preferred_element_type=jnp.float32)  # (rows, 3*H*Dp) f32

    HDp = num_heads * Dp
    # Cast the Q/K/V slabs to the MXU dtype once (hoisted out of head loops).
    q = qkv[:, 0 * HDp:1 * HDp].astype(compute_dtype)
    k = qkv[:, 1 * HDp:2 * HDp].astype(compute_dtype)
    v = qkv[:, 2 * HDp:3 * HDp].astype(compute_dtype)

    # Contract head_dim against head_dim: (Tq,Dp) x (S,Dp) -> (Tq,S); no k.T.
    dn = (((1,), (1,)), ((), ()))

    for b in range(Nb):
        r0 = b * S
        for h in range(num_heads):
            c0 = h * Dp                      # 128-aligned lane offset
            kh = k[r0:r0 + S, c0:c0 + Dp]    # (S, Dp)
            vh = v[r0:r0 + S, c0:c0 + Dp]    # (S, Dp)
            for q0 in range(0, S, q_block):
                qh = q[r0 + q0:r0 + q0 + q_block, c0:c0 + Dp]       # (Tq, Dp)

                s = lax.dot_general(qh, kh, dn,
                                    preferred_element_type=jnp.float32)  # (Tq, S)

                # Numerically-stable softmax over the key axis (f32 math;
                # denominator reciprocal goes to the EUP slot).
                m = jnp.max(s, axis=-1, keepdims=True)
                e = jnp.exp(s - m)
                denom = jnp.sum(e, axis=-1, keepdims=True)
                p = (e * pl.reciprocal(denom, approx=True)).astype(compute_dtype)

                oh = jnp.dot(p, vh, preferred_element_type=jnp.float32)  # (Tq, Dp)

                # Write this head's (unpadded) output straight into the
                # lane-dense merged slab: no concatenates, bounded live range.
                merged_ref[r0 + q0:r0 + q0 + q_block, h * Dh:(h + 1) * Dh] = (
                    oh[:, :Dh].astype(compute_dtype))

    # Output projection off the merged scratch slab (weight pre-transposed,
    # pre-cast); bias added once in f32.
    y = jnp.dot(merged_ref[...], wo_ref[...], preferred_element_type=jnp.float32)
    y = y + bo_ref[...]                                            # (1, E) broadcast
    o_ref[...] = y.reshape(Nb, S, E).astype(o_ref.dtype)


def _vmem_budget_bytes():
    """Generation-aware VMEM budget (v7x has 64 MiB/TC; v5e/v6e have 128 MiB)."""
    kind = ""
    try:
        kind = jax.devices()[0].device_kind.lower()
    except Exception:
        pass
    if "v7" in kind or "7x" in kind:
        return 48 * 1024 * 1024
    if "v5 lite" in kind or "v5e" in kind or "v5lite" in kind:
        return 64 * 1024 * 1024
    return 96 * 1024 * 1024


def _step_vmem_bytes(nb, S, E, H, Dp, tq, x_bytes, out_bytes, cbytes):
    """Approximate per-grid-step VMEM footprint (dominant terms)."""
    rows = nb * S
    qkv_cols = 3 * H * Dp
    total = 0
    total += 2 * rows * E * x_bytes           # x block (double-buffered)
    total += 2 * rows * E * out_bytes         # out block (double-buffered)
    total += E * qkv_cols * cbytes            # Wqkv (single-buffered)
    total += E * E * cbytes                   # Wo   (single-buffered)
    total += E * 4                            # bias (f32)
    total += rows * qkv_cols * 4              # qkv f32 projection result
    total += rows * qkv_cols * cbytes         # q/k/v compute-dtype copies
    total += rows * E * cbytes                # merged-heads scratch slab
    total += rows * E * 4                     # y (f32, pre-cast)
    total += tq * S * (3 * 4 + cbytes)        # per-head score / exp / p tiles
    total += tq * Dp * 4                      # per-head output tile
    return total


def _pick_blocks(N, S, E, H, Dp, x_bytes, out_bytes, cbytes, budget):
    # Query block: largest divisor of S that is <= 256 (bounds the score tile).
    tq = 1
    for cand in range(1, S + 1):
        if S % cand == 0 and cand <= 256:
            tq = cand
    # Batch block: largest divisor of N whose per-step footprint fits the
    # budget, clamped so the grid keeps >= 2 steps (megacore / v7x 2 TCs).
    nb = 1
    for cand in range(1, N + 1):
        if N % cand != 0:
            continue
        if N >= 2 and N // cand < 2:
            continue
        if _step_vmem_bytes(cand, S, E, H, Dp, tq, x_bytes, out_bytes, cbytes) <= budget:
            nb = cand
    return nb, tq


def multi_head_attention(x, wq, wk, wv, wo, bo, *, num_heads,
                         batch_block=None, q_block=None, compute_dtype=None):
    N, S, E = x.shape
    head_dim = E // num_heads
    assert num_heads * head_dim == E, "embed_dim must be divisible by num_heads"

    if compute_dtype is None:
        # bf16 operands (with f32 accumulation + f32 softmax) are MXU-native
        # on v5e/v6e/v7x; f32 inputs default to bf16 compute.
        compute_dtype = jnp.bfloat16 if x.dtype == jnp.float32 else x.dtype
    compute_dtype = jnp.dtype(compute_dtype)

    # Pad head_dim up to a 128-lane multiple inside the packed QKV weight so
    # per-head slices of the Q/K/V slabs are vreg-aligned.
    head_dim_pad = head_dim if head_dim % 128 == 0 else _round_up(head_dim, 128)

    cbytes = compute_dtype.itemsize
    budget = _vmem_budget_bytes()
    auto_nb, auto_tq = _pick_blocks(N, S, E, num_heads, head_dim_pad,
                                    x.dtype.itemsize, x.dtype.itemsize,
                                    cbytes, budget)
    if batch_block is None:
        batch_block = auto_nb
    if q_block is None:
        q_block = auto_tq
    assert N % batch_block == 0 and S % q_block == 0

    # Done ONCE in XLA (not per grid step): transpose nn.Linear weights to
    # (in, out), fold the 1/sqrt(head_dim) scale into Wq, zero-pad head_dim,
    # stack Q/K/V into one (E, 3*H*Dp) operand, and cast to compute_dtype.
    scale = 1.0 / float(head_dim) ** 0.5

    def _prep(w, fold_scale):
        wt = w.T.astype(jnp.float32)
        if fold_scale:
            wt = wt * scale
        wt = wt.reshape(E, num_heads, head_dim)
        if head_dim_pad != head_dim:
            wt = jnp.pad(wt, ((0, 0), (0, 0), (0, head_dim_pad - head_dim)))
        return wt.reshape(E, num_heads * head_dim_pad)

    wqkv = jnp.concatenate(
        [_prep(wq, True), _prep(wk, False), _prep(wv, False)],
        axis=1).astype(compute_dtype)                              # (E, 3*H*Dp)
    wo_t = wo.T.astype(compute_dtype)                              # (E, E)
    bo2 = bo.reshape(1, E).astype(jnp.float32)                     # bias stays f32

    kernel = functools.partial(
        mha_kernel, num_heads=num_heads, head_dim=head_dim,
        head_dim_pad=head_dim_pad, q_block=q_block, compute_dtype=compute_dtype)

    qkv_cols = 3 * num_heads * head_dim_pad
    grid = (N // batch_block,)

    def _call(single_buffer_weights):
        const_kw = {"pipeline_mode": pl.Buffered(1)} if single_buffer_weights else {}
        return pl.pallas_call(
            kernel,
            out_shape=jax.ShapeDtypeStruct((N, S, E), x.dtype),
            grid_spec=pltpu.PrefetchScalarGridSpec(
                num_scalar_prefetch=0,
                grid=grid,
                in_specs=[
                    # activations: new block each step (default double-buffered)
                    pl.BlockSpec((batch_block, S, E), lambda n: (n, 0, 0)),
                    # constant-index weights / bias: single buffer is enough
                    pl.BlockSpec((E, qkv_cols), lambda n: (0, 0), **const_kw),
                    pl.BlockSpec((E, E), lambda n: (0, 0), **const_kw),
                    pl.BlockSpec((1, E), lambda n: (0, 0), **const_kw),
                ],
                out_specs=pl.BlockSpec((batch_block, S, E), lambda n: (n, 0, 0)),
                scratch_shapes=[
                    pltpu.VMEM((batch_block * S, E), compute_dtype),  # merged heads
                ],
            ),
            compiler_params=pltpu.CompilerParams(
                dimension_semantics=("parallel",),
                vmem_limit_bytes=budget,
            ),
        )(x, wqkv, wo_t, bo2)

    try:
        return _call(True)
    except Exception:
        # Fallback if pipeline_mode=pl.Buffered(1) is rejected by this JAX
        # build: identical math, default (double) buffering of the weights.
        return _call(False)


def reference_mha(x, wq, wk, wv, wo, bo, *, num_heads):
    # Pure-JAX reference mirroring the PyTorch forward.
    N, S, E = x.shape
    Dh = E // num_heads
    q = (x @ wq.T).reshape(N, S, num_heads, Dh).transpose(0, 2, 1, 3)
    k = (x @ wk.T).reshape(N, S, num_heads, Dh).transpose(0, 2, 1, 3)
    v = (x @ wv.T).reshape(N, S, num_heads, Dh).transpose(0, 2, 1, 3)
    energy = jnp.einsum('nhqd,nhkd->nhqk', q, k) / jnp.sqrt(jnp.float32(Dh))
    attn = jax.nn.softmax(energy, axis=3)
    out = jnp.einsum('nhqk,nhkd->nhqd', attn, v).transpose(0, 2, 1, 3).reshape(N, S, E)
    return out @ wo.T + bo


if __name__ == "__main__":
    # Small shapes consistent with the module.
    N, S, E, H = 2, 8, 32, 4

    key = jax.random.PRNGKey(0)
    kx, kq, kk, kv, ko, kb = jax.random.split(key, 6)

    x = jax.random.normal(kx, (N, S, E), dtype=jnp.float32)
    # Deterministic parameter init (PyTorch Linear weight layout: (out, in)).
    wq = jax.random.normal(kq, (E, E), dtype=jnp.float32) * 0.1
    wk = jax.random.normal(kk, (E, E), dtype=jnp.float32) * 0.1
    wv = jax.random.normal(kv, (E, E), dtype=jnp.float32) * 0.1
    wo = jax.random.normal(ko, (E, E), dtype=jnp.float32) * 0.1
    bo = jax.random.normal(kb, (E,), dtype=jnp.float32) * 0.1

    y_ref = reference_mha(x, wq, wk, wv, wo, bo, num_heads=H)

    # Strict-parity path (f32 MXU operands): tight check vs the reference
    # (tolerance loosened slightly only for the EUP approx reciprocal).
    y_f32 = multi_head_attention(x, wq, wk, wv, wo, bo, num_heads=H,
                                 compute_dtype=jnp.float32)
    y_f32 = jax.block_until_ready(y_f32)
    assert jnp.allclose(y_f32, y_ref, atol=2e-2, rtol=2e-2), "f32 mismatch vs reference"

    # Default fast path (bf16 MXU operands, f32 accumulation + f32 softmax).
    y_bf16 = multi_head_attention(x, wq, wk, wv, wo, bo, num_heads=H)
    y_bf16 = jax.block_until_ready(y_bf16)
    assert jnp.allclose(y_bf16, y_ref, atol=1e-1, rtol=1e-1), "bf16 mismatch vs reference"

    print("KERNEL_OK")
</pallas_src>

<mosaic_0001>
module attributes {stable_mosaic.version = 11 : i64} {
  func.func @mha_kernel(%arg0: i32, %arg1: memref<1x8x32xf32, #tpu.memory_space<vmem>>, %arg2: memref<32x1536xf32, #tpu.memory_space<vmem>>, %arg3: memref<32x32xf32, #tpu.memory_space<vmem>>, %arg4: memref<1x32xf32, #tpu.memory_space<vmem>>, %arg5: memref<1x8x32xf32, #tpu.memory_space<vmem>>, %arg6: memref<8x32xf32, #tpu.memory_space<vmem>>) attributes {dimension_semantics = [#tpu.dimension_semantics<parallel>], iteration_bounds = array<i64: 2>, scalar_prefetch = 0 : i64, scratch_operands = 1 : i64, tpu.core_type = #tpu.core_type<tc>, window_params = [{transform_indices = @transform_0, window_bounds = array<i64: 1, 8, 32>}, {pipeline_mode = #tpu.pipeline_mode<synchronous>, transform_indices = @transform_1, window_bounds = array<i64: 32, 1536>}, {pipeline_mode = #tpu.pipeline_mode<synchronous>, transform_indices = @transform_2, window_bounds = array<i64: 32, 32>}, {pipeline_mode = #tpu.pipeline_mode<synchronous>, transform_indices = @transform_3, window_bounds = array<i64: 1, 32>}, {transform_indices = @transform_4, window_bounds = array<i64: 1, 8, 32>}]} {
    %c0 = arith.constant 0 : index
    %c0_0 = arith.constant 0 : index
    %c0_1 = arith.constant 0 : index
    %0 = vector.load %arg1[%c0, %c0_0, %c0_1] : memref<1x8x32xf32, #tpu.memory_space<vmem>>, vector<1x8x32xf32>
    %1 = vector.shape_cast %0 : vector<1x8x32xf32> to vector<8x32xf32>
    %c0_2 = arith.constant 0 : index
    %c0_3 = arith.constant 0 : index
    %2 = vector.load %arg2[%c0_2, %c0_3] : memref<32x1536xf32, #tpu.memory_space<vmem>>, vector<32x1536xf32>
    %cst = arith.constant dense<0.000000e+00> : vector<8x1536xf32>
    %3 = tpu.matmul %1, %2, %cst {dimension_numbers = #tpu.dot_dimension_numbers<[1], [0], [0], [1], [0, 0, 1, 1], [], []>} : vector<8x32xf32>, vector<32x1536xf32>, vector<8x1536xf32> -> vector<8x1536xf32>
    %4 = vector.extract_strided_slice %3 {offsets = [0, 0], sizes = [8, 512], strides = [1, 1]} : vector<8x1536xf32> to vector<8x512xf32>
    %5 = vector.extract_strided_slice %3 {offsets = [0, 512], sizes = [8, 512], strides = [1, 1]} : vector<8x1536xf32> to vector<8x512xf32>
    %6 = vector.extract_strided_slice %3 {offsets = [0, 1024], sizes = [8, 512], strides = [1, 1]} : vector<8x1536xf32> to vector<8x512xf32>
    %7 = vector.extract_strided_slice %5 {offsets = [0, 0], sizes = [8, 128], strides = [1, 1]} : vector<8x512xf32> to vector<8x128xf32>
    %8 = vector.extract_strided_slice %6 {offsets = [0, 0], sizes = [8, 128], strides = [1, 1]} : vector<8x512xf32> to vector<8x128xf32>
    %9 = vector.extract_strided_slice %4 {offsets = [0, 0], sizes = [8, 128], strides = [1, 1]} : vector<8x512xf32> to vector<8x128xf32>
    %cst_4 = arith.constant dense<0.000000e+00> : vector<8x8xf32>
    %10 = tpu.matmul %9, %7, %cst_4 {dimension_numbers = #tpu.dot_dimension_numbers<[1], [1], [0], [0], [0, 0, 1, 0], [], []>} : vector<8x128xf32>, vector<8x128xf32>, vector<8x8xf32> -> vector<8x8xf32>
    %cst_5 = arith.constant dense<0xFF800000> : vector<8xf32>
    %11 = vector.multi_reduction <maximumf>, %10, %cst_5 [1] : vector<8x8xf32> to vector<8xf32>
    %12 = vector.shape_cast %11 : vector<8xf32> to vector<8x1xf32>
    %13 = vector.broadcast %12 : vector<8x1xf32> to vector<8x8xf32>
    %14 = arith.subf %10, %13 : vector<8x8xf32>
    %15 = math.exp %14 : vector<8x8xf32>
    %cst_6 = arith.constant dense<0.000000e+00> : vector<8xf32>
    %16 = vector.multi_reduction <add>, %15, %cst_6 [1] : vector<8x8xf32> to vector<8xf32>
    %17 = vector.shape_cast %16 : vector<8xf32> to vector<8x1xf32>
    %18 = tpu.reciprocal %17 {approx = true} : vector<8x1xf32> -> vector<8x1xf32>
    %19 = vector.broadcast %18 : vector<8x1xf32> to vector<8x8xf32>
    %20 = arith.mulf %15, %19 : vector<8x8xf32>
    %cst_7 = arith.constant dense<0.000000e+00> : vector<8x128xf32>
    %21 = tpu.matmul %20, %8, %cst_7 {dimension_numbers = #tpu.dot_dimension_numbers<[1], [0], [0], [1], [0, 0, 1, 1], [], []>} : vector<8x8xf32>, vector<8x128xf32>, vector<8x128xf32> -> vector<8x128xf32>
    %22 = vector.extract_strided_slice %21 {offsets = [0, 0], sizes = [8, 8], strides = [1, 1]} : vector<8x128xf32> to vector<8x8xf32>
    %c0_8 = arith.constant 0 : index
    %c0_9 = arith.constant 0 : index
    %23 = vector.load %arg6[%c0_8, %c0_9] : memref<8x32xf32, #tpu.memory_space<vmem>>, vector<8x8xf32>
    tpu.vector_store %arg6[%c0_8, %c0_9], %22 {strides = array<i32>} : memref<8x32xf32, #tpu.memory_space<vmem>>, vector<8x8xf32>,
    %24 = vector.extract_strided_slice %5 {offsets = [0, 128], sizes = [8, 128], strides = [1, 1]} : vector<8x512xf32> to vector<8x128xf32>
    %25 = vector.extract_strided_slice %6 {offsets = [0, 128], sizes = [8, 128], strides = [1, 1]} : vector<8x512xf32> to vector<8x128xf32>
    %26 = vector.extract_strided_slice %4 {offsets = [0, 128], sizes = [8, 128], strides = [1, 1]} : vector<8x512xf32> to vector<8x128xf32>
    %cst_10 = arith.constant dense<0.000000e+00> : vector<8x8xf32>
    %27 = tpu.matmul %26, %24, %cst_10 {dimension_numbers = #tpu.dot_dimension_numbers<[1], [1], [0], [0], [0, 0, 1, 0], [], []>} : vector<8x128xf32>, vector<8x128xf32>, vector<8x8xf32> -> vector<8x8xf32>
    %cst_11 = arith.constant dense<0xFF800000> : vector<8xf32>
    %28 = vector.multi_reduction <maximumf>, %27, %cst_11 [1] : vector<8x8xf32> to vector<8xf32>
    %29 = vector.shape_cast %28 : vector<8xf32> to vector<8x1xf32>
    %30 = vector.broadcast %29 : vector<8x1xf32> to vector<8x8xf32>
    %31 = arith.subf %27, %30 : vector<8x8xf32>
    %32 = math.exp %31 : vector<8x8xf32>
    %cst_12 = arith.constant dense<0.000000e+00> : vector<8xf32>
    %33 = vector.multi_reduction <add>, %32, %cst_12 [1] : vector<8x8xf32> to vector<8xf32>
    %34 = vector.shape_cast %33 : vector<8xf32> to vector<8x1xf32>
    %35 = tpu.reciprocal %34 {approx = true} : vector<8x1xf32> -> vector<8x1xf32>
    %36 = vector.broadcast %35 : vector<8x1xf32> to vector<8x8xf32>
    %37 = arith.mulf %32, %36 : vector<8x8xf32>
    %cst_13 = arith.constant dense<0.000000e+00> : vector<8x128xf32>
    %38 = tpu.matmul %37, %25, %cst_13 {dimension_numbers = #tpu.dot_dimension_numbers<[1], [0], [0], [1], [0, 0, 1, 1], [], []>} : vector<8x8xf32>, vector<8x128xf32>, vector<8x128xf32> -> vector<8x128xf32>
    %39 = vector.extract_strided_slice %38 {offsets = [0, 0], sizes = [8, 8], strides = [1, 1]} : vector<8x128xf32> to vector<8x8xf32>
    %c0_14 = arith.constant 0 : index
    %c8 = arith.constant 8 : index
    %40 = vector.load %arg6[%c0_14, %c8] : memref<8x32xf32, #tpu.memory_space<vmem>>, vector<8x8xf32>
    tpu.vector_store %arg6[%c0_14, %c8], %39 {strides = array<i32>} : memref<8x32xf32, #tpu.memory_space<vmem>>, vector<8x8xf32>,
    %41 = vector.extract_strided_slice %5 {offsets = [0, 256], sizes = [8, 128], strides = [1, 1]} : vector<8x512xf32> to vector<8x128xf32>
    %42 = vector.extract_strided_slice %6 {offsets = [0, 256], sizes = [8, 128], strides = [1, 1]} : vector<8x512xf32> to vector<8x128xf32>
    %43 = vector.extract_strided_slice %4 {offsets = [0, 256], sizes = [8, 128], strides = [1, 1]} : vector<8x512xf32> to vector<8x128xf32>
    %cst_15 = arith.constant dense<0.000000e+00> : vector<8x8xf32>
    %44 = tpu.matmul %43, %41, %cst_15 {dimension_numbers = #tpu.dot_dimension_numbers<[1], [1], [0], [0], [0, 0, 1, 0], [], []>} : vector<8x128xf32>, vector<8x128xf32>, vector<8x8xf32> -> vector<8x8xf32>
    %cst_16 = arith.constant dense<0xFF800000> : vector<8xf32>
    %45 = vector.multi_reduction <maximumf>, %44, %cst_16 [1] : vector<8x8xf32> to vector<8xf32>
    %46 = vector.shape_cast %45 : vector<8xf32> to vector<8x1xf32>
    %47 = vector.broadcast %46 : vector<8x1xf32> to vector<8x8xf32>
    %48 = arith.subf %44, %47 : vector<8x8xf32>
    %49 = math.exp %48 : vector<8x8xf32>
    %cst_17 = arith.constant dense<0.000000e+00> : vector<8xf32>
    %50 = vector.multi_reduction <add>, %49, %cst_17 [1] : vector<8x8xf32> to vector<8xf32>
    %51 = vector.shape_cast %50 : vector<8xf32> to vector<8x1xf32>
    %52 = tpu.reciprocal %51 {approx = true} : vector<8x1xf32> -> vector<8x1xf32>
    %53 = vector.broadcast %52 : vector<8x1xf32> to vector<8x8xf32>
    %54 = arith.mulf %49, %53 : vector<8x8xf32>
    %cst_18 = arith.constant dense<0.000000e+00> : vector<8x128xf32>
    %55 = tpu.matmul %54, %42, %cst_18 {dimension_numbers = #tpu.dot_dimension_numbers<[1], [0], [0], [1], [0, 0, 1, 1], [], []>} : vector<8x8xf32>, vector<8x128xf32>, vector<8x128xf32> -> vector<8x128xf32>
    %56 = vector.extract_strided_slice %55 {offsets = [0, 0], sizes = [8, 8], strides = [1, 1]} : vector<8x128xf32> to vector<8x8xf32>
    %c0_19 = arith.constant 0 : index
    %c16 = arith.constant 16 : index
    %57 = vector.load %arg6[%c0_19, %c16] : memref<8x32xf32, #tpu.memory_space<vmem>>, vector<8x8xf32>
    tpu.vector_store %arg6[%c0_19, %c16], %56 {strides = array<i32>} : memref<8x32xf32, #tpu.memory_space<vmem>>, vector<8x8xf32>,
    %58 = vector.extract_strided_slice %5 {offsets = [0, 384], sizes = [8, 128], strides = [1, 1]} : vector<8x512xf32> to vector<8x128xf32>
    %59 = vector.extract_strided_slice %6 {offsets = [0, 384], sizes = [8, 128], strides = [1, 1]} : vector<8x512xf32> to vector<8x128xf32>
    %60 = vector.extract_strided_slice %4 {offsets = [0, 384], sizes = [8, 128], strides = [1, 1]} : vector<8x512xf32> to vector<8x128xf32>
    %cst_20 = arith.constant dense<0.000000e+00> : vector<8x8xf32>
    %61 = tpu.matmul %60, %58, %cst_20 {dimension_numbers = #tpu.dot_dimension_numbers<[1], [1], [0], [0], [0, 0, 1, 0], [], []>} : vector<8x128xf32>, vector<8x128xf32>, vector<8x8xf32> -> vector<8x8xf32>
    %cst_21 = arith.constant dense<0xFF800000> : vector<8xf32>
    %62 = vector.multi_reduction <maximumf>, %61, %cst_21 [1] : vector<8x8xf32> to vector<8xf32>
    %63 = vector.shape_cast %62 : vector<8xf32> to vector<8x1xf32>
    %64 = vector.broadcast %63 : vector<8x1xf32> to vector<8x8xf32>
    %65 = arith.subf %61, %64 : vector<8x8xf32>
    %66 = math.exp %65 : vector<8x8xf32>
    %cst_22 = arith.constant dense<0.000000e+00> : vector<8xf32>
    %67 = vector.multi_reduction <add>, %66, %cst_22 [1] : vector<8x8xf32> to vector<8xf32>
    %68 = vector.shape_cast %67 : vector<8xf32> to vector<8x1xf32>
    %69 = tpu.reciprocal %68 {approx = true} : vector<8x1xf32> -> vector<8x1xf32>
    %70 = vector.broadcast %69 : vector<8x1xf32> to vector<8x8xf32>
    %71 = arith.mulf %66, %70 : vector<8x8xf32>
    %cst_23 = arith.constant dense<0.000000e+00> : vector<8x128xf32>
    %72 = tpu.matmul %71, %59, %cst_23 {dimension_numbers = #tpu.dot_dimension_numbers<[1], [0], [0], [1], [0, 0, 1, 1], [], []>} : vector<8x8xf32>, vector<8x128xf32>, vector<8x128xf32> -> vector<8x128xf32>
    %73 = vector.extract_strided_slice %72 {offsets = [0, 0], sizes = [8, 8], strides = [1, 1]} : vector<8x128xf32> to vector<8x8xf32>
    %c0_24 = arith.constant 0 : index
    %c24 = arith.constant 24 : index
    %74 = vector.load %arg6[%c0_24, %c24] : memref<8x32xf32, #tpu.memory_space<vmem>>, vector<8x8xf32>
    tpu.vector_store %arg6[%c0_24, %c24], %73 {strides = array<i32>} : memref<8x32xf32, #tpu.memory_space<vmem>>, vector<8x8xf32>,
    %c0_25 = arith.constant 0 : index
    %c0_26 = arith.constant 0 : index
    %75 = vector.load %arg6[%c0_25, %c0_26] : memref<8x32xf32, #tpu.memory_space<vmem>>, vector<8x32xf32>
    %c0_27 = arith.constant 0 : index
    %c0_28 = arith.constant 0 : index
    %76 = vector.load %arg3[%c0_27, %c0_28] : memref<32x32xf32, #tpu.memory_space<vmem>>, vector<32x32xf32>
    %cst_29 = arith.constant dense<0.000000e+00> : vector<8x32xf32>
    %77 = tpu.matmul %75, %76, %cst_29 {dimension_numbers = #tpu.dot_dimension_numbers<[1], [0], [0], [1], [0, 0, 1, 1], [], []>} : vector<8x32xf32>, vector<32x32xf32>, vector<8x32xf32> -> vector<8x32xf32>
    %c0_30 = arith.constant 0 : index
    %c0_31 = arith.constant 0 : index
    %78 = vector.load %arg4[%c0_30, %c0_31] : memref<1x32xf32, #tpu.memory_space<vmem>>, vector<1x32xf32>
    %79 = vector.broadcast %78 : vector<1x32xf32> to vector<8x32xf32>
    %80 = arith.addf %77, %79 : vector<8x32xf32>
    %81 = vector.shape_cast %80 : vector<8x32xf32> to vector<1x8x32xf32>
    %c0_32 = arith.constant 0 : index
    %c0_33 = arith.constant 0 : index
    %c0_34 = arith.constant 0 : index
    %82 = vector.load %arg5[%c0_32, %c0_33, %c0_34] : memref<1x8x32xf32, #tpu.memory_space<vmem>>, vector<1x8x32xf32>
    tpu.vector_store %arg5[%c0_32, %c0_33, %c0_34], %81 {strides = array<i32>} : memref<1x8x32xf32, #tpu.memory_space<vmem>>, vector<1x8x32xf32>,
    return
  }
  func.func @transform_0(%arg0: i32) -> (i32, i32, i32) {
    %c0_i32 = arith.constant 0 : i32
    %c0_i32_0 = arith.constant 0 : i32
    %c0_i32_1 = arith.constant 0 : i32
    return %arg0, %c0_i32, %c0_i32_0 : i32, i32, i32
  }
  func.func @transform_1(%arg0: i32) -> (i32, i32) {
    %c0_i32 = arith.constant 0 : i32
    %c0_i32_0 = arith.constant 0 : i32
    %c0_i32_1 = arith.constant 0 : i32
    return %c0_i32, %c0_i32_0 : i32, i32
  }
  func.func @transform_2(%arg0: i32) -> (i32, i32) {
    %c0_i32 = arith.constant 0 : i32
    %c0_i32_0 = arith.constant 0 : i32
    %c0_i32_1 = arith.constant 0 : i32
    return %c0_i32, %c0_i32_0 : i32, i32
  }
  func.func @transform_3(%arg0: i32) -> (i32, i32) {
    %c0_i32 = arith.constant 0 : i32
    %c0_i32_0 = arith.constant 0 : i32
    %c0_i32_1 = arith.constant 0 : i32
    return %c0_i32, %c0_i32_0 : i32, i32
  }
  func.func @transform_4(%arg0: i32) -> (i32, i32, i32) {
    %c0_i32 = arith.constant 0 : i32
    %c0_i32_0 = arith.constant 0 : i32
    %c0_i32_1 = arith.constant 0 : i32
    return %arg0, %c0_i32, %c0_i32_0 : i32, i32, i32
  }
}

module attributes {stable_mosaic.version = 11 : i64} {
  func.func @mha_kernel(%arg0: i32, %arg1: memref<1x8x32xf32, #tpu.memory_space<vmem>>, %arg2: memref<32x1536xf32, #tpu.memory_space<vmem>>, %arg3: memref<32x32xf32, #tpu.memory_space<vmem>>, %arg4: memref<1x32xf32, #tpu.memory_space<vmem>>, %arg5: memref<1x8x32xf32, #tpu.memory_space<vmem>>, %arg6: memref<8x32xf32, #tpu.memory_space<vmem>>) attributes {dimension_semantics = [#tpu.dimension_semantics<parallel>], iteration_bounds = array<i64: 2>, scalar_prefetch = 0 : i64, scratch_operands = 1 : i64, tpu.core_type = #tpu.core_type<tc>, window_params = [{transform_indices = @transform_0, window_bounds = array<i64: 1, 8, 32>}, {pipeline_mode = #tpu.pipeline_mode<synchronous>, transform_indices = @transform_1, window_bounds = array<i64: 32, 1536>}, {pipeline_mode = #tpu.pipeline_mode<synchronous>, transform_indices = @transform_2, window_bounds = array<i64: 32, 32>}, {pipeline_mode = #tpu.pipeline_mode<synchronous>, transform_indices = @transform_3, window_bounds = array<i64: 1, 32>}, {transform_indices = @transform_4, window_bounds = array<i64: 1, 8, 32>}]} {
    %c0 = arith.constant 0 : index
    %c0_0 = arith.constant 0 : index
    %c0_1 = arith.constant 0 : index
    %0 = vector.load %arg1[%c0, %c0_0, %c0_1] : memref<1x8x32xf32, #tpu.memory_space<vmem>>, vector<1x8x32xf32>
    %1 = vector.shape_cast %0 : vector<1x8x32xf32> to vector<8x32xf32>
    %c0_2 = arith.constant 0 : index
    %c0_3 = arith.constant 0 : index
    %2 = vector.load %arg2[%c0_2, %c0_3] : memref<32x1536xf32, #tpu.memory_space<vmem>>, vector<32x1536xf32>
    %cst = arith.constant dense<0.000000e+00> : vector<8x1536xf32>
    %3 = tpu.matmul %1, %2, %cst {dimension_numbers = #tpu.dot_dimension_numbers<[1], [0], [0], [1], [0, 0, 1, 1], [], []>} : vector<8x32xf32>, vector<32x1536xf32>, vector<8x1536xf32> -> vector<8x1536xf32>
    %4 = vector.extract_strided_slice %3 {offsets = [0, 0], sizes = [8, 512], strides = [1, 1]} : vector<8x1536xf32> to vector<8x512xf32>
    %5 = vector.extract_strided_slice %3 {offsets = [0, 512], sizes = [8, 512], strides = [1, 1]} : vector<8x1536xf32> to vector<8x512xf32>
    %6 = vector.extract_strided_slice %3 {offsets = [0, 1024], sizes = [8, 512], strides = [1, 1]} : vector<8x1536xf32> to vector<8x512xf32>
    %7 = vector.extract_strided_slice %5 {offsets = [0, 0], sizes = [8, 128], strides = [1, 1]} : vector<8x512xf32> to vector<8x128xf32>
    %8 = vector.extract_strided_slice %6 {offsets = [0, 0], sizes = [8, 128], strides = [1, 1]} : vector<8x512xf32> to vector<8x128xf32>
    %9 = vector.extract_strided_slice %4 {offsets = [0, 0], sizes = [8, 128], strides = [1, 1]} : vector<8x512xf32> to vector<8x128xf32>
    %cst_4 = arith.constant dense<0.000000e+00> : vector<8x8xf32>
    %10 = tpu.matmul %9, %7, %cst_4 {dimension_numbers = #tpu.dot_dimension_numbers<[1], [1], [0], [0], [0, 0, 1, 0], [], []>} : vector<8x128xf32>, vector<8x128xf32>, vector<8x8xf32> -> vector<8x8xf32>
    %cst_5 = arith.constant dense<0xFF800000> : vector<8xf32>
    %11 = vector.multi_reduction <maximumf>, %10, %cst_5 [1] : vector<8x8xf32> to vector<8xf32>
    %12 = vector.shape_cast %11 : vector<8xf32> to vector<8x1xf32>
    %13 = vector.broadcast %12 : vector<8x1xf32> to vector<8x8xf32>
    %14 = arith.subf %10, %13 : vector<8x8xf32>
    %15 = math.exp %14 : vector<8x8xf32>
    %cst_6 = arith.constant dense<0.000000e+00> : vector<8xf32>
    %16 = vector.multi_reduction <add>, %15, %cst_6 [1] : vector<8x8xf32> to vector<8xf32>
    %17 = vector.shape_cast %16 : vector<8xf32> to vector<8x1xf32>
    %18 = tpu.reciprocal %17 {approx = true} : vector<8x1xf32> -> vector<8x1xf32>
    %19 = vector.broadcast %18 : vector<8x1xf32> to vector<8x8xf32>
    %20 = arith.mulf %15, %19 : vector<8x8xf32>
    %cst_7 = arith.constant dense<0.000000e+00> : vector<8x128xf32>
    %21 = tpu.matmul %20, %8, %cst_7 {dimension_numbers = #tpu.dot_dimension_numbers<[1], [0], [0], [1], [0, 0, 1, 1], [], []>} : vector<8x8xf32>, vector<8x128xf32>, vector<8x128xf32> -> vector<8x128xf32>
    %22 = vector.extract_strided_slice %21 {offsets = [0, 0], sizes = [8, 8], strides = [1, 1]} : vector<8x128xf32> to vector<8x8xf32>
    %c0_8 = arith.constant 0 : index
    %c0_9 = arith.constant 0 : index
    %23 = vector.load %arg6[%c0_8, %c0_9] : memref<8x32xf32, #tpu.memory_space<vmem>>, vector<8x8xf32>
    tpu.vector_store %arg6[%c0_8, %c0_9], %22 {strides = array<i32>} : memref<8x32xf32, #tpu.memory_space<vmem>>, vector<8x8xf32>,
    %24 = vector.extract_strided_slice %5 {offsets = [0, 128], sizes = [8, 128], strides = [1, 1]} : vector<8x512xf32> to vector<8x128xf32>
    %25 = vector.extract_strided_slice %6 {offsets = [0, 128], sizes = [8, 128], strides = [1, 1]} : vector<8x512xf32> to vector<8x128xf32>
    %26 = vector.extract_strided_slice %4 {offsets = [0, 128], sizes = [8, 128], strides = [1, 1]} : vector<8x512xf32> to vector<8x128xf32>
    %cst_10 = arith.constant dense<0.000000e+00> : vector<8x8xf32>
    %27 = tpu.matmul %26, %24, %cst_10 {dimension_numbers = #tpu.dot_dimension_numbers<[1], [1], [0], [0], [0, 0, 1, 0], [], []>} : vector<8x128xf32>, vector<8x128xf32>, vector<8x8xf32> -> vector<8x8xf32>
    %cst_11 = arith.constant dense<0xFF800000> : vector<8xf32>
    %28 = vector.multi_reduction <maximumf>, %27, %cst_11 [1] : vector<8x8xf32> to vector<8xf32>
    %29 = vector.shape_cast %28 : vector<8xf32> to vector<8x1xf32>
    %30 = vector.broadcast %29 : vector<8x1xf32> to vector<8x8xf32>
    %31 = arith.subf %27, %30 : vector<8x8xf32>
    %32 = math.exp %31 : vector<8x8xf32>
    %cst_12 = arith.constant dense<0.000000e+00> : vector<8xf32>
    %33 = vector.multi_reduction <add>, %32, %cst_12 [1] : vector<8x8xf32> to vector<8xf32>
    %34 = vector.shape_cast %33 : vector<8xf32> to vector<8x1xf32>
    %35 = tpu.reciprocal %34 {approx = true} : vector<8x1xf32> -> vector<8x1xf32>
    %36 = vector.broadcast %35 : vector<8x1xf32> to vector<8x8xf32>
    %37 = arith.mulf %32, %36 : vector<8x8xf32>
    %cst_13 = arith.constant dense<0.000000e+00> : vector<8x128xf32>
    %38 = tpu.matmul %37, %25, %cst_13 {dimension_numbers = #tpu.dot_dimension_numbers<[1], [0], [0], [1], [0, 0, 1, 1], [], []>} : vector<8x8xf32>, vector<8x128xf32>, vector<8x128xf32> -> vector<8x128xf32>
    %39 = vector.extract_strided_slice %38 {offsets = [0, 0], sizes = [8, 8], strides = [1, 1]} : vector<8x128xf32> to vector<8x8xf32>
    %c0_14 = arith.constant 0 : index
    %c8 = arith.constant 8 : index
    %40 = vector.load %arg6[%c0_14, %c8] : memref<8x32xf32, #tpu.memory_space<vmem>>, vector<8x8xf32>
    tpu.vector_store %arg6[%c0_14, %c8], %39 {strides = array<i32>} : memref<8x32xf32, #tpu.memory_space<vmem>>, vector<8x8xf32>,
    %41 = vector.extract_strided_slice %5 {offsets = [0, 256], sizes = [8, 128], strides = [1, 1]} : vector<8x512xf32> to vector<8x128xf32>
    %42 = vector.extract_strided_slice %6 {offsets = [0, 256], sizes = [8, 128], strides = [1, 1]} : vector<8x512xf32> to vector<8x128xf32>
    %43 = vector.extract_strided_slice %4 {offsets = [0, 256], sizes = [8, 128], strides = [1, 1]} : vector<8x512xf32> to vector<8x128xf32>
    %cst_15 = arith.constant dense<0.000000e+00> : vector<8x8xf32>
    %44 = tpu.matmul %43, %41, %cst_15 {dimension_numbers = #tpu.dot_dimension_numbers<[1], [1], [0], [0], [0, 0, 1, 0], [], []>} : vector<8x128xf32>, vector<8x128xf32>, vector<8x8xf32> -> vector<8x8xf32>
    %cst_16 = arith.constant dense<0xFF800000> : vector<8xf32>
    %45 = vector.multi_reduction <maximumf>, %44, %cst_16 [1] : vector<8x8xf32> to vector<8xf32>
    %46 = vector.shape_cast %45 : vector<8xf32> to vector<8x1xf32>
    %47 = vector.broadcast %46 : vector<8x1xf32> to vector<8x8xf32>
    %48 = arith.subf %44, %47 : vector<8x8xf32>
    %49 = math.exp %48 : vector<8x8xf32>
    %cst_17 = arith.constant dense<0.000000e+00> : vector<8xf32>
    %50 = vector.multi_reduction <add>, %49, %cst_17 [1] : vector<8x8xf32> to vector<8xf32>
    %51 = vector.shape_cast %50 : vector<8xf32> to vector<8x1xf32>
    %52 = tpu.reciprocal %51 {approx = true} : vector<8x1xf32> -> vector<8x1xf32>
    %53 = vector.broadcast %52 : vector<8x1xf32> to vector<8x8xf32>
    %54 = arith.mulf %49, %53 : vector<8x8xf32>
    %cst_18 = arith.constant dense<0.000000e+00> : vector<8x128xf32>
    %55 = tpu.matmul %54, %42, %cst_18 {dimension_numbers = #tpu.dot_dimension_numbers<[1], [0], [0], [1], [0, 0, 1, 1], [], []>} : vector<8x8xf32>, vector<8x128xf32>, vector<8x128xf32> -> vector<8x128xf32>
    %56 = vector.extract_strided_slice %55 {offsets = [0, 0], sizes = [8, 8], strides = [1, 1]} : vector<8x128xf32> to vector<8x8xf32>
    %c0_19 = arith.constant 0 : index
    %c16 = arith.constant 16 : index
    %57 = vector.load %arg6[%c0_19, %c16] : memref<8x32xf32, #tpu.memory_space<vmem>>, vector<8x8xf32>
    tpu.vector_store %arg6[%c0_19, %c16], %56 {strides = array<i32>} : memref<8x32xf32, #tpu.memory_space<vmem>>, vector<8x8xf32>,
    %58 = vector.extract_strided_slice %5 {offsets = [0, 384], sizes = [8, 128], strides = [1, 1]} : vector<8x512xf32> to vector<8x128xf32>
    %59 = vector.extract_strided_slice %6 {offsets = [0, 384], sizes = [8, 128], strides = [1, 1]} : vector<8x512xf32> to vector<8x128xf32>
    %60 = vector.extract_strided_slice %4 {offsets = [0, 384], sizes = [8, 128], strides = [1, 1]} : vector<8x512xf32> to vector<8x128xf32>
    %cst_20 = arith.constant dense<0.000000e+00> : vector<8x8xf32>
    %61 = tpu.matmul %60, %58, %cst_20 {dimension_numbers = #tpu.dot_dimension_numbers<[1], [1], [0], [0], [0, 0, 1, 0], [], []>} : vector<8x128xf32>, vector<8x128xf32>, vector<8x8xf32> -> vector<8x8xf32>
    %cst_21 = arith.constant dense<0xFF800000> : vector<8xf32>
    %62 = vector.multi_reduction <maximumf>, %61, %cst_21 [1] : vector<8x8xf32> to vector<8xf32>
    %63 = vector.shape_cast %62 : vector<8xf32> to vector<8x1xf32>
    %64 = vector.broadcast %63 : vector<8x1xf32> to vector<8x8xf32>
    %65 = arith.subf %61, %64 : vector<8x8xf32>
    %66 = math.exp %65 : vector<8x8xf32>
    %cst_22 = arith.constant dense<0.000000e+00> : vector<8xf32>
    %67 = vector.multi_reduction <add>, %66, %cst_22 [1] : vector<8x8xf32> to vector<8xf32>
    %68 = vector.shape_cast %67 : vector<8xf32> to vector<8x1xf32>
    %69 = tpu.reciprocal %68 {approx = true} : vector<8x1xf32> -> vector<8x1xf32>
    %70 = vector.broadcast %69 : vector<8x1xf32> to vector<8x8xf32>
    %71 = arith.mulf %66, %70 : vector<8x8xf32>
    %cst_23 = arith.constant dense<0.000000e+00> : vector<8x128xf32>
    %72 = tpu.matmul %71, %59, %cst_23 {dimension_numbers = #tpu.dot_dimension_numbers<[1], [0], [0], [1], [0, 0, 1, 1], [], []>} : vector<8x8xf32>, vector<8x128xf32>, vector<8x128xf32> -> vector<8x128xf32>
    %73 = vector.extract_strided_slice %72 {offsets = [0, 0], sizes = [8, 8], strides = [1, 1]} : vector<8x128xf32> to vector<8x8xf32>
    %c0_24 = arith.constant 0 : index
    %c24 = arith.constant 24 : index
    %74 = vector.load %arg6[%c0_24, %c24] : memref<8x32xf32, #tpu.memory_space<vmem>>, vector<8x8xf32>
    tpu.vector_store %arg6[%c0_24, %c24], %73 {strides = array<i32>} : memref<8x32xf32, #tpu.memory_space<vmem>>, vector<8x8xf32>,
    %c0_25 = arith.constant 0 : index
    %c0_26 = arith.constant 0 : index
    %75 = vector.load %arg6[%c0_25, %c0_26] : memref<8x32xf32, #tpu.memory_space<vmem>>, vector<8x32xf32>
    %c0_27 = arith.constant 0 : index
    %c0_28 = arith.constant 0 : index
    %76 = vector.load %arg3[%c0_27, %c0_28] : memref<32x32xf32, #tpu.memory_space<vmem>>, vector<32x32xf32>
    %cst_29 = arith.constant dense<0.000000e+00> : vector<8x32xf32>
    %77 = tpu.matmul %75, %76, %cst_29 {dimension_numbers = #tpu.dot_dimension_numbers<[1], [0], [0], [1], [0, 0, 1, 1], [], []>} : vector<8x32xf32>, vector<32x32xf32>, vector<8x32xf32> -> vector<8x32xf32>
    %c0_30 = arith.constant 0 : index
    %c0_31 = arith.constant 0 : index
    %78 = vector.load %arg4[%c0_30, %c0_31] : memref<1x32xf32, #tpu.memory_space<vmem>>, vector<1x32xf32>
    %79 = vector.broadcast %78 : vector<1x32xf32> to vector<8x32xf32>
    %80 = arith.addf %77, %79 : vector<8x32xf32>
    %81 = vector.shape_cast %80 : vector<8x32xf32> to vector<1x8x32xf32>
    %c0_32 = arith.constant 0 : index
    %c0_33 = arith.constant 0 : index
    %c0_34 = arith.constant 0 : index
    %82 = vector.load %arg5[%c0_32, %c0_33, %c0_34] : memref<1x8x32xf32, #tpu.memory_space<vmem>>, vector<1x8x32xf32>
    tpu.vector_store %arg5[%c0_32, %c0_33, %c0_34], %81 {strides = array<i32>} : memref<1x8x32xf32, #tpu.memory_space<vmem>>, vector<1x8x32xf32>,
    return
  }
  func.func @transform_0(%arg0: i32) -> (i32, i32, i32) {
    %c0_i32 = arith.constant 0 : i32
    %c0_i32_0 = arith.constant 0 : i32
    %c0_i32_1 = arith.constant 0 : i32
    return %arg0, %c0_i32, %c0_i32_0 : i32, i32, i32
  }
  func.func @transform_1(%arg0: i32) -> (i32, i32) {
    %c0_i32 = arith.constant 0 : i32
    %c0_i32_0 = arith.constant 0 : i32
    %c0_i32_1 = arith.constant 0 : i32
    return %c0_i32, %c0_i32_0 : i32, i32
  }
  func.func @transform_2(%arg0: i32) -> (i32, i32) {
    %c0_i32 = arith.constant 0 : i32
    %c0_i32_0 = arith.constant 0 : i32
    %c0_i32_1 = arith.constant 0 : i32
    return %c0_i32, %c0_i32_0 : i32, i32
  }
  func.func @transform_3(%arg0: i32) -> (i32, i32) {
    %c0_i32 = arith.constant 0 : i32
    %c0_i32_0 = arith.constant 0 : i32
    %c0_i32_1 = arith.constant 0 : i32
    return %c0_i32, %c0_i32_0 : i32, i32
  }
  func.func @transform_4(%arg0: i32) -> (i32, i32, i32) {
    %c0_i32 = arith.constant 0 : i32
    %c0_i32_0 = arith.constant 0 : i32
    %c0_i32_1 = arith.constant 0 : i32
    return %arg0, %c0_i32, %c0_i32_0 : i32, i32, i32
  }
}

</mosaic_0001>

<llo_original>
// kernel: tpu_custom_call.1
$region0: #{tpu_custom_call.1}
  #allocation0 [shape = 'u32[]', space=smem, size = 0x4, offset = 0x4, fixed_abs, tag = 'smem constant byte address 0x4 - core index']
  #allocation1 [shape = 'u32[72,128]{1,0:T(1,128)}', space=vmem, size = 0x9000, scoped, tag = 'internal scratch']
  #allocation2 [shape = 'f32[8,32]{1,0:T(8,128)}', space=vmem, size = 0x1000, scoped, tag = 'scratch operand']
  %s0 = inlined_call_operand.hbm [shape: f32[2,8,32], index: 0, kind: input, shape index: {}]
  %s1 = inlined_call_operand.hbm [shape: f32[32,1536], index: 1, kind: input, shape index: {}]
  %s2 = inlined_call_operand.hbm [shape: f32[32,32], index: 2, kind: input, shape index: {}]
  %s3 = inlined_call_operand.vmem [shape: f32[1,32], index: 3, kind: input, shape index: {}]
  %s4 = inlined_call_operand.hbm [shape: f32[2,8,32], index: 4, kind: output, shape index: {}]
  %s5 = sld [smem:[#allocation0]]
  $region61: #{tpu_custom_call.1} parent=0
    _
  %s7 = ssub.s32 1, %s5
  %s8 = scalar_select 0, %s7, %s5
  $region1: #{tpu_custom_call.1} parent=0
    #allocation3 [shape = 'u8[8192]{0}', space=vmem, size = 0x2000, scoped, tag = 'input window, operand 0']
    #allocation4 [shape = 's32[2]{0}', space=sflag, size = 0x8, scoped, tag = 'scoped memory for tpu_custom_call.1']
    #allocation5 [shape = 's32[2]{0}', space=sflag, size = 0x8, scoped, tag = 'scoped memory for tpu_custom_call.1']
    #allocation6 [shape = 'u8[196608]{0}', space=vmem, size = 0x30000, scoped, tag = 'input window, operand 1, single buffered']
    #allocation7 [shape = 's32[1]{0}', space=sflag, size = 0x4, scoped, tag = 'scoped memory for tpu_custom_call.1']
    #allocation8 [shape = 'u8[16384]{0}', space=vmem, size = 0x4000, scoped, tag = 'input window, operand 2, single buffered']
    #allocation9 [shape = 'u8[8192]{0}', space=vmem, size = 0x2000, scoped, tag = 'output window, operand 0']
    %9 = vsyncpa [#allocation4], 0
    %s10 = scalar_lea.sflag [#allocation4], 1
    %11 = vsyncpa %s10, 0
    %12 = vsyncpa [#allocation7], 0
    %13 = vsyncpa [#allocation5], 0
    %s14 = scalar_lea.sflag [#allocation5], 1
    %15 = vsyncpa %s14, 0
    loop: start=0, step=1, limit=4
    $region2: #{tpu_custom_call.1} parent=1 // loop_pre_header
      _
    $region3: #{tpu_custom_call.1} parent=1 // loop_header
      %s17 = sphi 0, %s21
      %p18 = scmp.ge.s32.totalorder %s17, 4
      %s27 = sphi 0, %s29
      %s30 = sphi 0, %s27
      %s31 = sphi 0, %s30
      %s47 = sphi 0, %s31
      %s51 = sphi 0, %s51
      %s53 = sphi 0, %s51
      %s54 = sphi 0, %s53
      %s68 = sphi 0, %s54
      %s72 = sphi 0, %s72
      %s74 = sphi 0, %s72
      %s75 = sphi 0, %s74
      %s89 = sphi 0, %s75
      %s93 = sphi 0, %s93
      %s95 = sphi 0, %s93
      %s96 = sphi 0, %s95
      %s110 = sphi 0, %s96
      %s116 = sphi 0, %s118
      %s119 = sphi 0, %s116
      %s120 = sphi 0, %s119
      %s136 = sphi 0, %s120
    $region4: #{tpu_custom_call.1} parent=1 // loop_header_branch
      %20 = sbr.rel (%p18) target = $region8
    $region5: #{tpu_custom_call.1} parent=1 // loop_body
      %s22 = ssub.s32 %s17, 1
      %s23 = ssub.s32 %s17, 2
      %s24 = sadd.s32 %s17, 1
      %s25 = ssub.s32 %s17, %s24
      %p26 = scmp.eq.s32.totalorder %s25, 0
      %s28 = sadd.s32 %s27, 1
      %s29 = scalar_select %p26, %s27, %s28
      %p32 = pneg %p26
      %p33 = scmp.eq.s32.totalorder %s17, 1
      %p34 = por %p32, %p33
      %p35 = scmp.ne.s32.totalorder %s27, %s30
      %p36 = scmp.eq.s32.totalorder %s17, 0
      %p37 = por %p35, %p36
      %p38 = scmp.ne.s32.totalorder %s27, %s30
      %p39 = scmp.eq.s32.totalorder %s22, 1
      %p40 = por %p38, %p39
      %p41 = scmp.ne.s32.totalorder %s30, %s31
      %p42 = scmp.eq.s32.totalorder %s22, 0
      %p43 = por %p41, %p42
      %p44 = scmp.ne.s32.totalorder %s30, %s31
      %p45 = scmp.eq.s32.totalorder %s23, 1
      %p46 = por %p44, %p45
      %p48 = scmp.ne.s32.totalorder %s31, %s47
      %p49 = scmp.eq.s32.totalorder %s23, 0
      %p50 = por %p48, %p49
      %s52 = sadd.s32 %s51, 1
      %p55 = scmp.eq.s32.totalorder %s17, 1
      %p56 = scmp.ne.s32.totalorder %s51, %s53
      %p57 = scmp.eq.s32.totalorder %s17, 0
      %p58 = por %p56, %p57
      %p59 = scmp.ne.s32.totalorder %s51, %s53
      %p60 = scmp.eq.s32.totalorder %s22, 1
      %p61 = por %p59, %p60
      %p62 = scmp.ne.s32.totalorder %s53, %s54
      %p63 = scmp.eq.s32.totalorder %s22, 0
      %p64 = por %p62, %p63
      %p65 = scmp.ne.s32.totalorder %s53, %s54
      %p66 = scmp.eq.s32.totalorder %s23, 1
      %p67 = por %p65, %p66
      %p69 = scmp.ne.s32.totalorder %s54, %s68
      %p70 = scmp.eq.s32.totalorder %s23, 0
      %p71 = por %p69, %p70
      %s73 = sadd.s32 %s72, 1
      %p76 = scmp.eq.s32.totalorder %s17, 1
      %p77 = scmp.ne.s32.totalorder %s72, %s74
      %p78 = scmp.eq.s32.totalorder %s17, 0
      %p79 = por %p77, %p78
      %p80 = scmp.ne.s32.totalorder %s72, %s74
      %p81 = scmp.eq.s32.totalorder %s22, 1
      %p82 = por %p80, %p81
      %p83 = scmp.ne.s32.totalorder %s74, %s75
      %p84 = scmp.eq.s32.totalorder %s22, 0
      %p85 = por %p83, %p84
      %p86 = scmp.ne.s32.totalorder %s74, %s75
      %p87 = scmp.eq.s32.totalorder %s23, 1
      %p88 = por %p86, %p87
      %p90 = scmp.ne.s32.totalorder %s75, %s89
      %p91 = scmp.eq.s32.totalorder %s23, 0
      %p92 = por %p90, %p91
      %s94 = sadd.s32 %s93, 1
      %p97 = scmp.eq.s32.totalorder %s17, 1
      %p98 = scmp.ne.s32.totalorder %s93, %s95
      %p99 = scmp.eq.s32.totalorder %s17, 0
      %p100 = por %p98, %p99
      %p101 = scmp.ne.s32.totalorder %s93, %s95
      %p102 = scmp.eq.s32.totalorder %s22, 1
      %p103 = por %p101, %p102
      %p104 = scmp.ne.s32.totalorder %s95, %s96
      %p105 = scmp.eq.s32.totalorder %s22, 0
      %p106 = por %p104, %p105
      %p107 = scmp.ne.s32.totalorder %s95, %s96
      %p108 = scmp.eq.s32.totalorder %s23, 1
      %p109 = por %p107, %p108
      %p111 = scmp.ne.s32.totalorder %s96, %s110
      %p112 = scmp.eq.s32.totalorder %s23, 0
      %p113 = por %p111, %p112
      %s114 = ssub.s32 %s17, %s24
      %p115 = scmp.eq.s32.totalorder %s114, 0
      %s117 = sadd.s32 %s116, 1
      %s118 = scalar_select %p115, %s116, %s117
      %p121 = pneg %p115
      %p122 = scmp.eq.s32.totalorder %s17, 1
      %p123 = por %p121, %p122
      %p124 = scmp.ne.s32.totalorder %s116, %s119
      %p125 = scmp.eq.s32.totalorder %s17, 0
      %p126 = por %p124, %p125
      %p127 = scmp.ne.s32.totalorder %s116, %s119
      %p128 = scmp.eq.s32.totalorder %s22, 1
      %p129 = por %p127, %p128
      %p130 = scmp.ne.s32.totalorder %s119, %s120
      %p131 = scmp.eq.s32.totalorder %s22, 0
      %p132 = por %p130, %p131
      %p133 = scmp.ne.s32.totalorder %s119, %s120
      %p134 = scmp.eq.s32.totalorder %s23, 1
      %p135 = por %p133, %p134
      %p137 = scmp.ne.s32.totalorder %s120, %s136
      %p138 = scmp.eq.s32.totalorder %s23, 0
      %p139 = por %p137, %p138
      %p140 = scmp.le.s32.totalorder 1, %s17
      %p141 = scmp.lt.s32.totalorder %s17, 3
      %p142 = pnand %p140, %p141
      %p143 = pneg %p142
      // Predicated region
      $region9: #{tpu_custom_call.1} parent=5 // pred_check
        _
      $region10: #{tpu_custom_call.1} parent=5 // pred_check_branch
        %145 = sbr.rel (%p142) target = $region12
      $region11: #{tpu_custom_call.1} parent=5 // pred_region
        %s146 = ssub.s32 %s17, 1
        // Predicated region
        $region13: #{tpu_custom_call.1} parent=11 // pred_check
          %p147 = pneg %p64
        $region14: #{tpu_custom_call.1} parent=11 // pred_check_branch
          %149 = sbr.rel (%p147) target = $region16
        $region15: #{tpu_custom_call.1} parent=11 // pred_region
          %151 = vsyncadd [#allocation7], 0
          %s152 = sshll.u32 %s1, 4
          %s153 = int_to_ptr.hbm [resolvable:$true] %s152
          %s154 = sshll.u32 [#allocation6], 4
          %s155 = int_to_ptr.vmem [resolvable:$true] %s154
          %160 = dma.hbm_to_vmem [thread:$0]  %s153, 6144, %s155, [#allocation7], 1536, 1536, 96
        $region16: #{tpu_custom_call.1} parent=11 // pred_fallthru
          _
        // Predicated region
        $region17: #{tpu_custom_call.1} parent=11 // pred_check
          %p161 = pneg %p85
        $region18: #{tpu_custom_call.1} parent=11 // pred_check_branch
          %163 = sbr.rel (%p161) target = $region20
        $region19: #{tpu_custom_call.1} parent=11 // pred_region
          %165 = vsyncadd [#allocation7], 0
          %s166 = sshll.u32 %s2, 4
          %s167 = int_to_ptr.hbm [resolvable:$true] %s166
          %s168 = sshll.u32 [#allocation8], 4
          %s169 = int_to_ptr.vmem [resolvable:$true] %s168
          %174 = dma.hbm_to_vmem [thread:$0]  %s167, 512, %s169, [#allocation7], 128, 128, 8
        $region20: #{tpu_custom_call.1} parent=11 // pred_fallthru
          _
        // Predicated region
        $region21: #{tpu_custom_call.1} parent=11 // pred_check
          %p175 = pneg %p106
        $region22: #{tpu_custom_call.1} parent=11 // pred_check_branch
          %177 = sbr.rel (%p175) target = $region24
        $region23: #{tpu_custom_call.1} parent=11 // pred_region
          _
        $region24: #{tpu_custom_call.1} parent=11 // pred_fallthru
          _
      $region12: #{tpu_custom_call.1} parent=5 // pred_fallthru
        _
      %p178 = scmp.lt.s32.totalorder %s17, 2
      // Predicated region
      $region25: #{tpu_custom_call.1} parent=5 // pred_check
        %p179 = pneg %p178
      $region26: #{tpu_custom_call.1} parent=5 // pred_check_branch
        %181 = sbr.rel (%p179) target = $region28
      $region27: #{tpu_custom_call.1} parent=5 // pred_region
        // Predicated region
        $region29: #{tpu_custom_call.1} parent=27 // pred_check
          %p182 = pneg %p37
        $region30: #{tpu_custom_call.1} parent=27 // pred_check_branch
          %184 = sbr.rel (%p182) target = $region32
        $region31: #{tpu_custom_call.1} parent=27 // pred_region
          %s185 = sand.u32 %s27, 1
          %s186 = scalar_lea.sflag [#allocation4], %s185
          %s187 = sand.u32 %s27, 1
          %s188 = smul.addr %s187, 8
          %s189 = scalar_lea.vmem [#allocation3], %s188
          %191 = vsyncadd %s186, 0
          %s192 = smul.addr %s17, 8
          %s193 = scalar_lea.hbm %s0, %s192
          %s195 = sshll.u32 %s193, 4
          %s196 = int_to_ptr.hbm [resolvable:$true] %s195
          %s197 = sshll.u32 %s189, 4
          %s198 = int_to_ptr.vmem [resolvable:$true] %s197
          %200 = dma.hbm_to_vmem [thread:$0]  %s196, 128, %s198, %s186
        $region32: #{tpu_custom_call.1} parent=27 // pred_fallthru
          _
      $region28: #{tpu_custom_call.1} parent=5 // pred_fallthru
        _
      %p201 = scmp.le.s32.totalorder 1, %s17
      %p202 = scmp.lt.s32.totalorder %s17, 3
      %p203 = pnand %p201, %p202
      %p204 = pneg %p203
      // Predicated region
      $region33: #{tpu_custom_call.1} parent=5 // pred_check
        _
      $region34: #{tpu_custom_call.1} parent=5 // pred_check_branch
        %206 = sbr.rel (%p203) target = $region36
      $region35: #{tpu_custom_call.1} parent=5 // pred_region
        %s207 = ssub.s32 %s17, 1
        %s208 = sand.u32 %s30, 1
        %s209 = scalar_lea.sflag [#allocation4], %s208
        %s210 = sand.u32 %s30, 1
        %s211 = smul.addr %s210, 8
        %s212 = scalar_lea.vmem [#allocation3], %s211
        // Predicated region
        $region37: #{tpu_custom_call.1} parent=35 // pred_check
          %p213 = pneg %p43
        $region38: #{tpu_custom_call.1} parent=35 // pred_check_branch
          %215 = sbr.rel (%p213) target = $region40
        $region39: #{tpu_custom_call.1} parent=35 // pred_region
          %217 = dma.done %s209, 128
        $region40: #{tpu_custom_call.1} parent=35 // pred_fallthru
          _
        // Predicated region
        $region41: #{tpu_custom_call.1} parent=35 // pred_check
          %p218 = pneg %p64
        $region42: #{tpu_custom_call.1} parent=35 // pred_check_branch
          %220 = sbr.rel (%p218) target = $region44
        $region43: #{tpu_custom_call.1} parent=35 // pred_region
          %222 = dma.done [#allocation7], 6144
        $region44: #{tpu_custom_call.1} parent=35 // pred_fallthru
          _
        // Predicated region
        $region45: #{tpu_custom_call.1} parent=35 // pred_check
          %p223 = pneg %p85
        $region46: #{tpu_custom_call.1} parent=35 // pred_check_branch
          %225 = sbr.rel (%p223) target = $region48
        $region47: #{tpu_custom_call.1} parent=35 // pred_region
          %227 = dma.done [#allocation7], 512
        $region48: #{tpu_custom_call.1} parent=35 // pred_fallthru
          _
        %s228 = sand.u32 %s30, 1
        %s229 = scalar_lea.sflag [#allocation4], %s228
        %s230 = sand.u32 %s30, 1
        %s231 = smul.addr %s230, 8
        %s232 = scalar_lea.vmem [#allocation3], %s231
        %p233 = pneg %p43
        %p234 = pneg %p40
        %p235 = pneg %p64
        %p236 = pneg %p61
        %p237 = pneg %p85
        %p238 = pneg %p82
        %p239 = pneg %p106
        %p240 = pneg %p103
        %p241 = pneg %p132
        %p242 = pneg %p129
        %s243 = sand.u32 %s119, 1
        %s244 = scalar_lea.sflag [#allocation5], %s243
        %s245 = sand.u32 %s119, 1
        %s246 = smul.addr %s245, 8
        %s247 = scalar_lea.vmem [#allocation9], %s246
        %v248 = vld [vmem:[%s212] sm:$0xff]
        %v249 = vld [vmem:[#allocation6] sm:$0xff]
        %v250 = vld [vmem:[#allocation6 + $0x8] sm:$0xff]
        %v251 = vld [vmem:[#allocation6 + $0x10] sm:$0xff]
        %v252 = vld [vmem:[#allocation6 + $0x18] sm:$0xff]
        %v253 = vld [vmem:[#allocation6 + $0x20] sm:$0xff]
        %v254 = vld [vmem:[#allocation6 + $0x28] sm:$0xff]
        %v255 = vld [vmem:[#allocation6 + $0x30] sm:$0xff]
        %v256 = vld [vmem:[#allocation6 + $0x38] sm:$0xff]
        %v257 = vld [vmem:[#allocation6 + $0x40] sm:$0xff]
        %v258 = vld [vmem:[#allocation6 + $0x48] sm:$0xff]
        %v259 = vld [vmem:[#allocation6 + $0x50] sm:$0xff]
        %v260 = vld [vmem:[#allocation6 + $0x58] sm:$0xff]
        %v261 = vld [vmem:[#allocation6 + $0x60] sm:$0xff]
        %v262 = vld [vmem:[#allocation6 + $0x68] sm:$0xff]
        %v263 = vld [vmem:[#allocation6 + $0x70] sm:$0xff]
        %v264 = vld [vmem:[#allocation6 + $0x78] sm:$0xff]
        %v265 = vld [vmem:[#allocation6 + $0x80] sm:$0xff]
        %v266 = vld [vmem:[#allocation6 + $0x88] sm:$0xff]
        %v267 = vld [vmem:[#allocation6 + $0x90] sm:$0xff]
        %v268 = vld [vmem:[#allocation6 + $0x98] sm:$0xff]
        %v269 = vld [vmem:[#allocation6 + $0xa0] sm:$0xff]
        %v270 = vld [vmem:[#allocation6 + $0xa8] sm:$0xff]
        %v271 = vld [vmem:[#allocation6 + $0xb0] sm:$0xff]
        %v272 = vld [vmem:[#allocation6 + $0xb8] sm:$0xff]
        %v273 = vld [vmem:[#allocation6 + $0xc0] sm:$0xff]
        %v274 = vld [vmem:[#allocation6 + $0xc8] sm:$0xff]
        %v275 = vld [vmem:[#allocation6 + $0xd0] sm:$0xff]
        %v276 = vld [vmem:[#allocation6 + $0xd8] sm:$0xff]
        %v277 = vld [vmem:[#allocation6 + $0xe0] sm:$0xff]
        %v278 = vld [vmem:[#allocation6 + $0xe8] sm:$0xff]
        %v279 = vld [vmem:[#allocation6 + $0xf0] sm:$0xff]
        %v280 = vld [vmem:[#allocation6 + $0xf8] sm:$0xff]
        %v281 = vld [vmem:[#allocation6 + $0x100] sm:$0xff]
        %v282 = vld [vmem:[#allocation6 + $0x108] sm:$0xff]
        %v283 = vld [vmem:[#allocation6 + $0x110] sm:$0xff]
        %v284 = vld [vmem:[#allocation6 + $0x118] sm:$0xff]
        %v285 = vld [vmem:[#allocation6 + $0x120] sm:$0xff]
        %v286 = vld [vmem:[#allocation6 + $0x128] sm:$0xff]
        %v287 = vld [vmem:[#allocation6 + $0x130] sm:$0xff]
        %v288 = vld [vmem:[#allocation6 + $0x138] sm:$0xff]
        %v289 = vld [vmem:[#allocation6 + $0x140] sm:$0xff]
        %v290 = vld [vmem:[#allocation6 + $0x148] sm:$0xff]
        %v291 = vld [vmem:[#allocation6 + $0x150] sm:$0xff]
        %v292 = vld [vmem:[#allocation6 + $0x158] sm:$0xff]
        %v293 = vld [vmem:[#allocation6 + $0x160] sm:$0xff]
        %v294 = vld [vmem:[#allocation6 + $0x168] sm:$0xff]
        %v295 = vld [vmem:[#allocation6 + $0x170] sm:$0xff]
        %v296 = vld [vmem:[#allocation6 + $0x178] sm:$0xff]
        %vm297 = vcmask 261120
        %v299 = vsel %vm297, %v248, 0
        %301 = vmatpush.msra.mxu0 0.0
        %302 = vmatpush.msra.mxu0 0.0
        %303 = vmatpush.msra.mxu0 0.0
        %304 = vmatpush.msra.mxu0 0.0
        %305 = vmatpush.msra.mxu0 0.0
        %306 = vmatpush.msra.mxu0 0.0
        %307 = vmatpush.msra.mxu0 0.0
        %308 = vmatpush.msra.mxu0 0.0
        %309 = vmatpush.msra.mxu0 0.0
        %310 = vmatpush.msra.mxu0 0.0
        %311 = vmatpush.msra.mxu0 0.0
        %312 = vmatpush.msra.mxu0 0.0
        %313 = vmatpush.msra.mxu0 %v285
        %314 = vmatpush.msra.mxu0 %v273
        %315 = vmatpush.msra.mxu0 %v261
        %316 = vmatpush.msra.mxu0 %v249
        %317 = vmatmul.f32.gmra.mxu0 %v299
        %v318 = vpop.f32.mrf.mxu0
        %v319 = vadd.f32 0.0, %v318
        %320 = vdwg.mxu0
        %321 = vmatpush.msra.mxu0 0.0
        %322 = vmatpush.msra.mxu0 0.0
        %323 = vmatpush.msra.mxu0 0.0
        %324 = vmatpush.msra.mxu0 0.0
        %325 = vmatpush.msra.mxu0 0.0
        %326 = vmatpush.msra.mxu0 0.0
        %327 = vmatpush.msra.mxu0 0.0
        %328 = vmatpush.msra.mxu0 0.0
        %329 = vmatpush.msra.mxu0 0.0
        %330 = vmatpush.msra.mxu0 0.0
        %331 = vmatpush.msra.mxu0 0.0
        %332 = vmatpush.msra.mxu0 0.0
        %333 = vmatpush.msra.mxu0 %v286
        %334 = vmatpush.msra.mxu0 %v274
        %335 = vmatpush.msra.mxu0 %v262
        %336 = vmatpush.msra.mxu0 %v250
        %337 = vmatmul.f32.gmra.mxu0 %v299
        %v338 = vpop.f32.mrf.mxu0
        %v339 = vadd.f32 0.0, %v338
        %340 = vdwg.mxu0
        %341 = vmatpush.msra.mxu0 0.0
        %342 = vmatpush.msra.mxu0 0.0
        %343 = vmatpush.msra.mxu0 0.0
        %344 = vmatpush.msra.mxu0 0.0
        %345 = vmatpush.msra.mxu0 0.0
        %346 = vmatpush.msra.mxu0 0.0
        %347 = vmatpush.msra.mxu0 0.0
        %348 = vmatpush.msra.mxu0 0.0
        %349 = vmatpush.msra.mxu0 0.0
        %350 = vmatpush.msra.mxu0 0.0
        %351 = vmatpush.msra.mxu0 0.0
        %352 = vmatpush.msra.mxu0 0.0
        %353 = vmatpush.msra.mxu0 %v287
        %354 = vmatpush.msra.mxu0 %v275
        %355 = vmatpush.msra.mxu0 %v263
        %356 = vmatpush.msra.mxu0 %v251
        %357 = vmatmul.f32.gmra.mxu0 %v299
        %v358 = vpop.f32.mrf.mxu0
        %v359 = vadd.f32 0.0, %v358
        %360 = vdwg.mxu0
        %361 = vmatpush.msra.mxu0 0.0
        %362 = vmatpush.msra.mxu0 0.0
        %363 = vmatpush.msra.mxu0 0.0
        %364 = vmatpush.msra.mxu0 0.0
        %365 = vmatpush.msra.mxu0 0.0
        %366 = vmatpush.msra.mxu0 0.0
        %367 = vmatpush.msra.mxu0 0.0
        %368 = vmatpush.msra.mxu0 0.0
        %369 = vmatpush.msra.mxu0 0.0
        %370 = vmatpush.msra.mxu0 0.0
        %371 = vmatpush.msra.mxu0 0.0
        %372 = vmatpush.msra.mxu0 0.0
        %373 = vmatpush.msra.mxu0 %v288
        %374 = vmatpush.msra.mxu0 %v276
        %375 = vmatpush.msra.mxu0 %v264
        %376 = vmatpush.msra.mxu0 %v252
        %377 = vmatmul.f32.gmra.mxu0 %v299
        %v378 = vpop.f32.mrf.mxu0
        %v379 = vadd.f32 0.0, %v378
        %380 = vdwg.mxu0
        %381 = vmatpush.msra.mxu0 0.0
        %382 = vmatpush.msra.mxu0 0.0
        %383 = vmatpush.msra.mxu0 0.0
        %384 = vmatpush.msra.mxu0 0.0
        %385 = vmatpush.msra.mxu0 0.0
        %386 = vmatpush.msra.mxu0 0.0
        %387 = vmatpush.msra.mxu0 0.0
        %388 = vmatpush.msra.mxu0 0.0
        %389 = vmatpush.msra.mxu0 0.0
        %390 = vmatpush.msra.mxu0 0.0
        %391 = vmatpush.msra.mxu0 0.0
        %392 = vmatpush.msra.mxu0 0.0
        %393 = vmatpush.msra.mxu0 %v289
        %394 = vmatpush.msra.mxu0 %v277
        %395 = vmatpush.msra.mxu0 %v265
        %396 = vmatpush.msra.mxu0 %v253
        %397 = vmatmul.f32.gmra.mxu0 %v299
        %v398 = vpop.f32.mrf.mxu0
        %v399 = vadd.f32 0.0, %v398
        %400 = vdwg.mxu0
        %401 = vmatpush.msra.mxu0 0.0
        %402 = vmatpush.msra.mxu0 0.0
        %403 = vmatpush.msra.mxu0 0.0
        %404 = vmatpush.msra.mxu0 0.0
        %405 = vmatpush.msra.mxu0 0.0
        %406 = vmatpush.msra.mxu0 0.0
        %407 = vmatpush.msra.mxu0 0.0
        %408 = vmatpush.msra.mxu0 0.0
        %409 = vmatpush.msra.mxu0 0.0
        %410 = vmatpush.msra.mxu0 0.0
        %411 = vmatpush.msra.mxu0 0.0
        %412 = vmatpush.msra.mxu0 0.0
        %413 = vmatpush.msra.mxu0 %v290
        %414 = vmatpush.msra.mxu0 %v278
        %415 = vmatpush.msra.mxu0 %v266
        %416 = vmatpush.msra.mxu0 %v254
        %417 = vmatmul.f32.gmra.mxu0 %v299
        %v418 = vpop.f32.mrf.mxu0
        %v419 = vadd.f32 0.0, %v418
        %420 = vdwg.mxu0
        %421 = vmatpush.msra.mxu0 0.0
        %422 = vmatpush.msra.mxu0 0.0
        %423 = vmatpush.msra.mxu0 0.0
        %424 = vmatpush.msra.mxu0 0.0
        %425 = vmatpush.msra.mxu0 0.0
        %426 = vmatpush.msra.mxu0 0.0
        %427 = vmatpush.msra.mxu0 0.0
        %428 = vmatpush.msra.mxu0 0.0
        %429 = vmatpush.msra.mxu0 0.0
        %430 = vmatpush.msra.mxu0 0.0
        %431 = vmatpush.msra.mxu0 0.0
        %432 = vmatpush.msra.mxu0 0.0
        %433 = vmatpush.msra.mxu0 %v291
        %434 = vmatpush.msra.mxu0 %v279
        %435 = vmatpush.msra.mxu0 %v267
        %436 = vmatpush.msra.mxu0 %v255
        %437 = vmatmul.f32.gmra.mxu0 %v299
        %v438 = vpop.f32.mrf.mxu0
        %v439 = vadd.f32 0.0, %v438
        %440 = vdwg.mxu0
        %441 = vmatpush.msra.mxu0 0.0
        %442 = vmatpush.msra.mxu0 0.0
        %443 = vmatpush.msra.mxu0 0.0
        %444 = vmatpush.msra.mxu0 0.0
        %445 = vmatpush.msra.mxu0 0.0
        %446 = vmatpush.msra.mxu0 0.0
        %447 = vmatpush.msra.mxu0 0.0
        %448 = vmatpush.msra.mxu0 0.0
        %449 = vmatpush.msra.mxu0 0.0
        %450 = vmatpush.msra.mxu0 0.0
        %451 = vmatpush.msra.mxu0 0.0
        %452 = vmatpush.msra.mxu0 0.0
        %453 = vmatpush.msra.mxu0 %v292
        %454 = vmatpush.msra.mxu0 %v280
        %455 = vmatpush.msra.mxu0 %v268
        %456 = vmatpush.msra.mxu0 %v256
        %457 = vmatmul.f32.gmra.mxu0 %v299
        %v458 = vpop.f32.mrf.mxu0
        %v459 = vadd.f32 0.0, %v458
        %460 = vdwg.mxu0
        %461 = vmatpush.msra.mxu0 0.0
        %462 = vmatpush.msra.mxu0 0.0
        %463 = vmatpush.msra.mxu0 0.0
        %464 = vmatpush.msra.mxu0 0.0
        %465 = vmatpush.msra.mxu0 0.0
        %466 = vmatpush.msra.mxu0 0.0
        %467 = vmatpush.msra.mxu0 0.0
        %468 = vmatpush.msra.mxu0 0.0
        %469 = vmatpush.msra.mxu0 0.0
        %470 = vmatpush.msra.mxu0 0.0
        %471 = vmatpush.msra.mxu0 0.0
        %472 = vmatpush.msra.mxu0 0.0
        %473 = vmatpush.msra.mxu0 %v293
        %474 = vmatpush.msra.mxu0 %v281
        %475 = vmatpush.msra.mxu0 %v269
        %476 = vmatpush.msra.mxu0 %v257
        %477 = vmatmul.f32.gmra.mxu0 %v299
        %v478 = vpop.f32.mrf.mxu0
        %v479 = vadd.f32 0.0, %v478
        %480 = vdwg.mxu0
        %481 = vmatpush.msra.mxu0 0.0
        %482 = vmatpush.msra.mxu0 0.0
        %483 = vmatpush.msra.mxu0 0.0
        %484 = vmatpush.msra.mxu0 0.0
        %485 = vmatpush.msra.mxu0 0.0
        %486 = vmatpush.msra.mxu0 0.0
        %487 = vmatpush.msra.mxu0 0.0
        %488 = vmatpush.msra.mxu0 0.0
        %489 = vmatpush.msra.mxu0 0.0
        %490 = vmatpush.msra.mxu0 0.0
        %491 = vmatpush.msra.mxu0 0.0
        %492 = vmatpush.msra.mxu0 0.0
        %493 = vmatpush.msra.mxu0 %v294
        %494 = vmatpush.msra.mxu0 %v282
        %495 = vmatpush.msra.mxu0 %v270
        %496 = vmatpush.msra.mxu0 %v258
        %497 = vmatmul.f32.gmra.mxu0 %v299
        %v498 = vpop.f32.mrf.mxu0
        %v499 = vadd.f32 0.0, %v498
        %500 = vdwg.mxu0
        %501 = vmatpush.msra.mxu0 0.0
        %502 = vmatpush.msra.mxu0 0.0
        %503 = vmatpush.msra.mxu0 0.0
        %504 = vmatpush.msra.mxu0 0.0
        %505 = vmatpush.msra.mxu0 0.0
        %506 = vmatpush.msra.mxu0 0.0
        %507 = vmatpush.msra.mxu0 0.0
        %508 = vmatpush.msra.mxu0 0.0
        %509 = vmatpush.msra.mxu0 0.0
        %510 = vmatpush.msra.mxu0 0.0
        %511 = vmatpush.msra.mxu0 0.0
        %512 = vmatpush.msra.mxu0 0.0
        %513 = vmatpush.msra.mxu0 %v295
        %514 = vmatpush.msra.mxu0 %v283
        %515 = vmatpush.msra.mxu0 %v271
        %516 = vmatpush.msra.mxu0 %v259
        %517 = vmatmul.f32.gmra.mxu0 %v299
        %v518 = vpop.f32.mrf.mxu0
        %v519 = vadd.f32 0.0, %v518
        %520 = vdwg.mxu0
        %521 = vmatpush.msra.mxu0 0.0
        %522 = vmatpush.msra.mxu0 0.0
        %523 = vmatpush.msra.mxu0 0.0
        %524 = vmatpush.msra.mxu0 0.0
        %525 = vmatpush.msra.mxu0 0.0
        %526 = vmatpush.msra.mxu0 0.0
        %527 = vmatpush.msra.mxu0 0.0
        %528 = vmatpush.msra.mxu0 0.0
        %529 = vmatpush.msra.mxu0 0.0
        %530 = vmatpush.msra.mxu0 0.0
        %531 = vmatpush.msra.mxu0 0.0
        %532 = vmatpush.msra.mxu0 0.0
        %533 = vmatpush.msra.mxu0 %v296
        %534 = vmatpush.msra.mxu0 %v284
        %535 = vmatpush.msra.mxu0 %v272
        %536 = vmatpush.msra.mxu0 %v260
        %537 = vmatmul.f32.gmra.mxu0 %v299
        %v538 = vpop.f32.mrf.mxu0
        %v539 = vadd.f32 0.0, %v538
        %540 = vdwg.mxu0
        %541 = vmatpush.xpose.msra.mxu0 0.0
        %542 = vmatpush.xpose.msra.mxu0 0.0
        %543 = vmatpush.xpose.msra.mxu0 0.0
        %544 = vmatpush.xpose.msra.mxu0 0.0
        %545 = vmatpush.xpose.msra.mxu0 0.0
        %546 = vmatpush.xpose.msra.mxu0 0.0
        %547 = vmatpush.xpose.msra.mxu0 0.0
        %548 = vmatpush.xpose.msra.mxu0 0.0
        %549 = vmatpush.xpose.msra.mxu0 0.0
        %550 = vmatpush.xpose.msra.mxu0 0.0
        %551 = vmatpush.xpose.msra.mxu0 0.0
        %552 = vmatpush.xpose.msra.mxu0 0.0
        %553 = vmatpush.xpose.msra.mxu0 0.0
        %554 = vmatpush.xpose.msra.mxu0 0.0
        %555 = vmatpush.xpose.msra.mxu0 0.0
        %556 = vmatpush.xpose.msra.mxu0 %v399
        %557 = vmatmul.f32.gmra.mxu0 %v319
        %v558 = vpop.f32.mrf.mxu0
        %v559 = vadd.f32 0.0, %v558
        %560 = vdwg.mxu0
        %vm561 = vcmask 64512
        %v562 = vsel %vm561, %v559, -inf
        %563 = vmax.xlane.f32.xlu0 %v562
        %v564 = vpop.xlane.xlu0 %563
        %v565 = vsub.f32 %v559, %v564
        %v566 = vmul.f32 %v565, 1.442695
        %v567 = vpow.pop %v566
        %v568 = vsel %vm561, %v567, 0.0
        %569 = vadd.xlane.f32.xlu0 %v568
        %v570 = vpop.xlane.xlu0 %569
        %v571 = vrcp.pop %v570
        %v572 = vmul.f32 %v567, %v571
        %v574 = vsel %vm561, %v572, 0
        %576 = vmatpush.msra.mxu0 0.0
        %577 = vmatpush.msra.mxu0 0.0
        %578 = vmatpush.msra.mxu0 0.0
        %579 = vmatpush.msra.mxu0 0.0
        %580 = vmatpush.msra.mxu0 0.0
        %581 = vmatpush.msra.mxu0 0.0
        %582 = vmatpush.msra.mxu0 0.0
        %583 = vmatpush.msra.mxu0 0.0
        %584 = vmatpush.msra.mxu0 0.0
        %585 = vmatpush.msra.mxu0 0.0
        %586 = vmatpush.msra.mxu0 0.0
        %587 = vmatpush.msra.mxu0 0.0
        %588 = vmatpush.msra.mxu0 0.0
        %589 = vmatpush.msra.mxu0 0.0
        %590 = vmatpush.msra.mxu0 0.0
        %591 = vmatpush.msra.mxu0 %v479
        %592 = vmatmul.f32.gmra.mxu0 %v574
        %v593 = vpop.f32.mrf.mxu0
        %v594 = vadd.f32 0.0, %v593
        %595 = vdwg.mxu0
        %596 = vst.msk [vmem:[#allocation2] sm:$0xff] %vm561, %v594
        %597 = vmatpush.xpose.msra.mxu0 0.0
        %598 = vmatpush.xpose.msra.mxu0 0.0
        %599 = vmatpush.xpose.msra.mxu0 0.0
        %600 = vmatpush.xpose.msra.mxu0 0.0
        %601 = vmatpush.xpose.msra.mxu0 0.0
        %602 = vmatpush.xpose.msra.mxu0 0.0
        %603 = vmatpush.xpose.msra.mxu0 0.0
        %604 = vmatpush.xpose.msra.mxu0 0.0
        %605 = vmatpush.xpose.msra.mxu0 0.0
        %606 = vmatpush.xpose.msra.mxu0 0.0
        %607 = vmatpush.xpose.msra.mxu0 0.0
        %608 = vmatpush.xpose.msra.mxu0 0.0
        %609 = vmatpush.xpose.msra.mxu0 0.0
        %610 = vmatpush.xpose.msra.mxu0 0.0
        %611 = vmatpush.xpose.msra.mxu0 0.0
        %612 = vmatpush.xpose.msra.mxu0 %v419
        %613 = vmatmul.f32.gmra.mxu0 %v339
        %v614 = vpop.f32.mrf.mxu0
        %v615 = vadd.f32 0.0, %v614
        %616 = vdwg.mxu0
        %v617 = vsel %vm561, %v615, -inf
        %618 = vmax.xlane.f32.xlu0 %v617
        %v619 = vpop.xlane.xlu0 %618
        %v620 = vsub.f32 %v615, %v619
        %v621 = vmul.f32 %v620, 1.442695
        %v622 = vpow.pop %v621
        %v623 = vsel %vm561, %v622, 0.0
        %624 = vadd.xlane.f32.xlu0 %v623
        %v625 = vpop.xlane.xlu0 %624
        %v626 = vrcp.pop %v625
        %v627 = vmul.f32 %v622, %v626
        %v629 = vsel %vm561, %v627, 0
        %631 = vmatpush.msra.mxu0 0.0
        %632 = vmatpush.msra.mxu0 0.0
        %633 = vmatpush.msra.mxu0 0.0
        %634 = vmatpush.msra.mxu0 0.0
        %635 = vmatpush.msra.mxu0 0.0
        %636 = vmatpush.msra.mxu0 0.0
        %637 = vmatpush.msra.mxu0 0.0
        %638 = vmatpush.msra.mxu0 0.0
        %639 = vmatpush.msra.mxu0 0.0
        %640 = vmatpush.msra.mxu0 0.0
        %641 = vmatpush.msra.mxu0 0.0
        %642 = vmatpush.msra.mxu0 0.0
        %643 = vmatpush.msra.mxu0 0.0
        %644 = vmatpush.msra.mxu0 0.0
        %645 = vmatpush.msra.mxu0 0.0
        %646 = vmatpush.msra.mxu0 %v499
        %647 = vmatmul.f32.gmra.mxu0 %v629
        %v648 = vpop.f32.mrf.mxu0
        %v649 = vadd.f32 0.0, %v648
        %650 = vdwg.mxu0
        %652 = vrot.lane.b32.xlu0 %v649, 8
        %v653 = vpop.permute.xlu0 %652
        %vm655 = vcmask 130112
        %656 = vst.msk [vmem:[#allocation2] sm:$0xff] %vm655, %v653
        %657 = vmatpush.xpose.msra.mxu0 0.0
        %658 = vmatpush.xpose.msra.mxu0 0.0
        %659 = vmatpush.xpose.msra.mxu0 0.0
        %660 = vmatpush.xpose.msra.mxu0 0.0
        %661 = vmatpush.xpose.msra.mxu0 0.0
        %662 = vmatpush.xpose.msra.mxu0 0.0
        %663 = vmatpush.xpose.msra.mxu0 0.0
        %664 = vmatpush.xpose.msra.mxu0 0.0
        %665 = vmatpush.xpose.msra.mxu0 0.0
        %666 = vmatpush.xpose.msra.mxu0 0.0
        %667 = vmatpush.xpose.msra.mxu0 0.0
        %668 = vmatpush.xpose.msra.mxu0 0.0
        %669 = vmatpush.xpose.msra.mxu0 0.0
        %670 = vmatpush.xpose.msra.mxu0 0.0
        %671 = vmatpush.xpose.msra.mxu0 0.0
        %672 = vmatpush.xpose.msra.mxu0 %v439
        %673 = vmatmul.f32.gmra.mxu0 %v359
        %v674 = vpop.f32.mrf.mxu0
        %v675 = vadd.f32 0.0, %v674
        %676 = vdwg.mxu0
        %v677 = vsel %vm561, %v675, -inf
        %678 = vmax.xlane.f32.xlu0 %v677
        %v679 = vpop.xlane.xlu0 %678
        %v680 = vsub.f32 %v675, %v679
        %v681 = vmul.f32 %v680, 1.442695
        %v682 = vpow.pop %v681
        %v683 = vsel %vm561, %v682, 0.0
        %684 = vadd.xlane.f32.xlu0 %v683
        %v685 = vpop.xlane.xlu0 %684
        %v686 = vrcp.pop %v685
        %v687 = vmul.f32 %v682, %v686
        %v689 = vsel %vm561, %v687, 0
        %691 = vmatpush.msra.mxu0 0.0
        %692 = vmatpush.msra.mxu0 0.0
        %693 = vmatpush.msra.mxu0 0.0
        %694 = vmatpush.msra.mxu0 0.0
        %695 = vmatpush.msra.mxu0 0.0
        %696 = vmatpush.msra.mxu0 0.0
        %697 = vmatpush.msra.mxu0 0.0
        %698 = vmatpush.msra.mxu0 0.0
        %699 = vmatpush.msra.mxu0 0.0
        %700 = vmatpush.msra.mxu0 0.0
        %701 = vmatpush.msra.mxu0 0.0
        %702 = vmatpush.msra.mxu0 0.0
        %703 = vmatpush.msra.mxu0 0.0
        %704 = vmatpush.msra.mxu0 0.0
        %705 = vmatpush.msra.mxu0 0.0
        %706 = vmatpush.msra.mxu0 %v519
        %707 = vmatmul.f32.gmra.mxu0 %v689
        %v708 = vpop.f32.mrf.mxu0
        %v709 = vadd.f32 0.0, %v708
        %710 = vdwg.mxu0
        %712 = vrot.lane.b32.xlu0 %v709, 16
        %v713 = vpop.permute.xlu0 %712
        %vm715 = vcmask 195712
        %716 = vst.msk [vmem:[#allocation2] sm:$0xff] %vm715, %v713
        %717 = vmatpush.xpose.msra.mxu0 0.0
        %718 = vmatpush.xpose.msra.mxu0 0.0
        %719 = vmatpush.xpose.msra.mxu0 0.0
        %720 = vmatpush.xpose.msra.mxu0 0.0
        %721 = vmatpush.xpose.msra.mxu0 0.0
        %722 = vmatpush.xpose.msra.mxu0 0.0
        %723 = vmatpush.xpose.msra.mxu0 0.0
        %724 = vmatpush.xpose.msra.mxu0 0.0
        %725 = vmatpush.xpose.msra.mxu0 0.0
        %726 = vmatpush.xpose.msra.mxu0 0.0
        %727 = vmatpush.xpose.msra.mxu0 0.0
        %728 = vmatpush.xpose.msra.mxu0 0.0
        %729 = vmatpush.xpose.msra.mxu0 0.0
        %730 = vmatpush.xpose.msra.mxu0 0.0
        %731 = vmatpush.xpose.msra.mxu0 0.0
        %732 = vmatpush.xpose.msra.mxu0 %v459
        %733 = vmatmul.f32.gmra.mxu0 %v379
        %v734 = vpop.f32.mrf.mxu0
        %v735 = vadd.f32 0.0, %v734
        %736 = vdwg.mxu0
        %v737 = vsel %vm561, %v735, -inf
        %738 = vmax.xlane.f32.xlu0 %v737
        %v739 = vpop.xlane.xlu0 %738
        %v740 = vsub.f32 %v735, %v739
        %v741 = vmul.f32 %v740, 1.442695
        %v742 = vpow.pop %v741
        %v743 = vsel %vm561, %v742, 0.0
        %744 = vadd.xlane.f32.xlu0 %v743
        %v745 = vpop.xlane.xlu0 %744
        %v746 = vrcp.pop %v745
        %v747 = vmul.f32 %v742, %v746
        %v749 = vsel %vm561, %v747, 0
        %751 = vmatpush.msra.mxu0 0.0
        %752 = vmatpush.msra.mxu0 0.0
        %753 = vmatpush.msra.mxu0 0.0
        %754 = vmatpush.msra.mxu0 0.0
        %755 = vmatpush.msra.mxu0 0.0
        %756 = vmatpush.msra.mxu0 0.0
        %757 = vmatpush.msra.mxu0 0.0
        %758 = vmatpush.msra.mxu0 0.0
        %759 = vmatpush.msra.mxu0 0.0
        %760 = vmatpush.msra.mxu0 0.0
        %761 = vmatpush.msra.mxu0 0.0
        %762 = vmatpush.msra.mxu0 0.0
        %763 = vmatpush.msra.mxu0 0.0
        %764 = vmatpush.msra.mxu0 0.0
        %765 = vmatpush.msra.mxu0 0.0
        %766 = vmatpush.msra.mxu0 %v539
        %767 = vmatmul.f32.gmra.mxu0 %v749
        %v768 = vpop.f32.mrf.mxu0
        %v769 = vadd.f32 0.0, %v768
        %770 = vdwg.mxu0
        %772 = vrot.lane.b32.xlu0 %v769, 24
        %v773 = vpop.permute.xlu0 %772
        %vm775 = vcmask 261312
        %776 = vst.msk [vmem:[#allocation2] sm:$0xff] %vm775, %v773
        %v777 = vld [vmem:[#allocation2] sm:$0xff]
        %v778 = vld [vmem:[#allocation8] sm:$0xff]
        %v779 = vld [vmem:[#allocation8 + $0x8] sm:$0xff]
        %v780 = vld [vmem:[#allocation8 + $0x10] sm:$0xff]
        %v781 = vld [vmem:[#allocation8 + $0x18] sm:$0xff]
        %v782 = vld [vmem:[%s3] sm:$0x1]
        %v784 = vperm.slane %v782, 0
        %v787 = vsel %vm297, %v777, 0
        %789 = vmatpush.msra.mxu0 0.0
        %790 = vmatpush.msra.mxu0 0.0
        %791 = vmatpush.msra.mxu0 0.0
        %792 = vmatpush.msra.mxu0 0.0
        %793 = vmatpush.msra.mxu0 0.0
        %794 = vmatpush.msra.mxu0 0.0
        %795 = vmatpush.msra.mxu0 0.0
        %796 = vmatpush.msra.mxu0 0.0
        %797 = vmatpush.msra.mxu0 0.0
        %798 = vmatpush.msra.mxu0 0.0
        %799 = vmatpush.msra.mxu0 0.0
        %800 = vmatpush.msra.mxu0 0.0
        %801 = vmatpush.msra.mxu0 %v781
        %802 = vmatpush.msra.mxu0 %v780
        %803 = vmatpush.msra.mxu0 %v779
        %804 = vmatpush.msra.mxu0 %v778
        %805 = vmatmul.f32.gmra.mxu0 %v787
        %v806 = vpop.f32.mrf.mxu0
        %v807 = vadd.f32 %v784, %v806
        %808 = vdwg.mxu0
        %809 = vst.msk [vmem:[%s247] sm:$0xff] %vm297, %v807
        %s810 = sand.u32 %s119, 1
        %s811 = scalar_lea.sflag [#allocation5], %s810
        %s812 = sand.u32 %s119, 1
        %s813 = smul.addr %s812, 8
        %s814 = scalar_lea.vmem [#allocation9], %s813
        // Predicated region
        $region49: #{tpu_custom_call.1} parent=35 // pred_check
          %p815 = pneg %p129
        $region50: #{tpu_custom_call.1} parent=35 // pred_check_branch
          %817 = sbr.rel (%p815) target = $region52
        $region51: #{tpu_custom_call.1} parent=35 // pred_region
          %819 = vsyncadd %s811, 0
          %s820 = smul.addr %s22, 8
          %s821 = scalar_lea.hbm %s4, %s820
          %s823 = sshll.u32 %s814, 4
          %s824 = int_to_ptr.vmem [resolvable:$true] %s823
          %s825 = sshll.u32 %s821, 4
          %s826 = int_to_ptr.hbm [resolvable:$true] %s825
          %828 = dma.vmem_to_hbm [thread:$0]  %s824, 128, %s826, %s811
        $region52: #{tpu_custom_call.1} parent=35 // pred_fallthru
          _
      $region36: #{tpu_custom_call.1} parent=5 // pred_fallthru
        _
      %p829 = scmp.le.s32.totalorder 2, %s17
      // Predicated region
      $region53: #{tpu_custom_call.1} parent=5 // pred_check
        %p830 = pneg %p829
      $region54: #{tpu_custom_call.1} parent=5 // pred_check_branch
        %832 = sbr.rel (%p830) target = $region56
      $region55: #{tpu_custom_call.1} parent=5 // pred_region
        %s833 = ssub.s32 %s17, 2
        // Predicated region
        $region57: #{tpu_custom_call.1} parent=55 // pred_check
          %p834 = pneg %p135
        $region58: #{tpu_custom_call.1} parent=55 // pred_check_branch
          %836 = sbr.rel (%p834) target = $region60
        $region59: #{tpu_custom_call.1} parent=55 // pred_region
          %s837 = sand.u32 %s120, 1
          %s838 = scalar_lea.sflag [#allocation5], %s837
          %s839 = sand.u32 %s120, 1
          %s840 = smul.addr %s839, 8
          %s841 = scalar_lea.vmem [#allocation9], %s840
          %843 = dma.done %s838, 128
        $region60: #{tpu_custom_call.1} parent=55 // pred_fallthru
          _
      $region56: #{tpu_custom_call.1} parent=5 // pred_fallthru
        _
    $region6: #{tpu_custom_call.1} parent=1 // loop_footer
      %s21 = sadd.s32 1, %s17
    $region7: #{tpu_custom_call.1} parent=1 // loop_footer_branch
      %16 = sbr.rel target = $region3
    $region8: #{tpu_custom_call.1} parent=1 // loop_exit
      _
    %844 = vsyncpa [#allocation4], 1
    %s845 = scalar_lea.sflag [#allocation4], 1
    %846 = vsyncpa %s845, 1
    %847 = vsyncpa [#allocation7], 1
    %848 = vsyncpa [#allocation5], 1
    %s849 = scalar_lea.sflag [#allocation5], 1
    %850 = vsyncpa %s849, 1

// kernel: tpu_custom_call.1
$region0: #{tpu_custom_call.1}
  #allocation0 [shape = 'u32[]', space=smem, size = 0x4, offset = 0x4, fixed_abs, tag = 'smem constant byte address 0x4 - core index']
  #allocation1 [shape = 'u32[72,128]{1,0:T(1,128)}', space=vmem, size = 0x9000, scoped, tag = 'internal scratch']
  #allocation2 [shape = 'f32[8,32]{1,0:T(8,128)}', space=vmem, size = 0x1000, scoped, tag = 'scratch operand']
  %s0 = inlined_call_operand.hbm [shape: f32[2,8,32], index: 0, kind: input, shape index: {}]
  %s1 = inlined_call_operand.hbm [shape: f32[32,1536], index: 1, kind: input, shape index: {}]
  %s2 = inlined_call_operand.hbm [shape: f32[32,32], index: 2, kind: input, shape index: {}]
  %s3 = inlined_call_operand.vmem [shape: f32[1,32], index: 3, kind: input, shape index: {}]
  %s4 = inlined_call_operand.hbm [shape: f32[2,8,32], index: 4, kind: output, shape index: {}]
  %s5 = sld [smem:[#allocation0]]
  $region61: #{tpu_custom_call.1} parent=0
    _
  %s7 = ssub.s32 1, %s5
  %s8 = scalar_select 0, %s7, %s5
  $region1: #{tpu_custom_call.1} parent=0
    #allocation3 [shape = 'u8[8192]{0}', space=vmem, size = 0x2000, scoped, tag = 'input window, operand 0']
    #allocation4 [shape = 's32[2]{0}', space=sflag, size = 0x8, scoped, tag = 'scoped memory for tpu_custom_call.1']
    #allocation5 [shape = 's32[2]{0}', space=sflag, size = 0x8, scoped, tag = 'scoped memory for tpu_custom_call.1']
    #allocation6 [shape = 'u8[196608]{0}', space=vmem, size = 0x30000, scoped, tag = 'input window, operand 1, single buffered']
    #allocation7 [shape = 's32[1]{0}', space=sflag, size = 0x4, scoped, tag = 'scoped memory for tpu_custom_call.1']
    #allocation8 [shape = 'u8[16384]{0}', space=vmem, size = 0x4000, scoped, tag = 'input window, operand 2, single buffered']
    #allocation9 [shape = 'u8[8192]{0}', space=vmem, size = 0x2000, scoped, tag = 'output window, operand 0']
    %9 = vsyncpa [#allocation4], 0
    %s10 = scalar_lea.sflag [#allocation4], 1
    %11 = vsyncpa %s10, 0
    %12 = vsyncpa [#allocation7], 0
    %13 = vsyncpa [#allocation5], 0
    %s14 = scalar_lea.sflag [#allocation5], 1
    %15 = vsyncpa %s14, 0
    loop: start=0, step=1, limit=4
    $region2: #{tpu_custom_call.1} parent=1 // loop_pre_header
      _
    $region3: #{tpu_custom_call.1} parent=1 // loop_header
      %s17 = sphi 0, %s21
      %p18 = scmp.ge.s32.totalorder %s17, 4
      %s27 = sphi 0, %s29
      %s30 = sphi 0, %s27
      %s31 = sphi 0, %s30
      %s47 = sphi 0, %s31
      %s51 = sphi 0, %s51
      %s53 = sphi 0, %s51
      %s54 = sphi 0, %s53
      %s68 = sphi 0, %s54
      %s72 = sphi 0, %s72
      %s74 = sphi 0, %s72
      %s75 = sphi 0, %s74
      %s89 = sphi 0, %s75
      %s93 = sphi 0, %s93
      %s95 = sphi 0, %s93
      %s96 = sphi 0, %s95
      %s110 = sphi 0, %s96
      %s116 = sphi 0, %s118
      %s119 = sphi 0, %s116
      %s120 = sphi 0, %s119
      %s136 = sphi 0, %s120
    $region4: #{tpu_custom_call.1} parent=1 // loop_header_branch
      %20 = sbr.rel (%p18) target = $region8
    $region5: #{tpu_custom_call.1} parent=1 // loop_body
      %s22 = ssub.s32 %s17, 1
      %s23 = ssub.s32 %s17, 2
      %s24 = sadd.s32 %s17, 1
      %s25 = ssub.s32 %s17, %s24
      %p26 = scmp.eq.s32.totalorder %s25, 0
      %s28 = sadd.s32 %s27, 1
      %s29 = scalar_select %p26, %s27, %s28
      %p32 = pneg %p26
      %p33 = scmp.eq.s32.totalorder %s17, 1
      %p34 = por %p32, %p33
      %p35 = scmp.ne.s32.totalorder %s27, %s30
      %p36 = scmp.eq.s32.totalorder %s17, 0
      %p37 = por %p35, %p36
      %p38 = scmp.ne.s32.totalorder %s27, %s30
      %p39 = scmp.eq.s32.totalorder %s22, 1
      %p40 = por %p38, %p39
      %p41 = scmp.ne.s32.totalorder %s30, %s31
      %p42 = scmp.eq.s32.totalorder %s22, 0
      %p43 = por %p41, %p42
      %p44 = scmp.ne.s32.totalorder %s30, %s31
      %p45 = scmp.eq.s32.totalorder %s23, 1
      %p46 = por %p44, %p45
      %p48 = scmp.ne.s32.totalorder %s31, %s47
      %p49 = scmp.eq.s32.totalorder %s23, 0
      %p50 = por %p48, %p49
      %s52 = sadd.s32 %s51, 1
      %p55 = scmp.eq.s32.totalorder %s17, 1
      %p56 = scmp.ne.s32.totalorder %s51, %s53
      %p57 = scmp.eq.s32.totalorder %s17, 0
      %p58 = por %p56, %p57
      %p59 = scmp.ne.s32.totalorder %s51, %s53
      %p60 = scmp.eq.s32.totalorder %s22, 1
      %p61 = por %p59, %p60
      %p62 = scmp.ne.s32.totalorder %s53, %s54
      %p63 = scmp.eq.s32.totalorder %s22, 0
      %p64 = por %p62, %p63
      %p65 = scmp.ne.s32.totalorder %s53, %s54
      %p66 = scmp.eq.s32.totalorder %s23, 1
      %p67 = por %p65, %p66
      %p69 = scmp.ne.s32.totalorder %s54, %s68
      %p70 = scmp.eq.s32.totalorder %s23, 0
      %p71 = por %p69, %p70
      %s73 = sadd.s32 %s72, 1
      %p76 = scmp.eq.s32.totalorder %s17, 1
      %p77 = scmp.ne.s32.totalorder %s72, %s74
      %p78 = scmp.eq.s32.totalorder %s17, 0
      %p79 = por %p77, %p78
      %p80 = scmp.ne.s32.totalorder %s72, %s74
      %p81 = scmp.eq.s32.totalorder %s22, 1
      %p82 = por %p80, %p81
      %p83 = scmp.ne.s32.totalorder %s74, %s75
      %p84 = scmp.eq.s32.totalorder %s22, 0
      %p85 = por %p83, %p84
      %p86 = scmp.ne.s32.totalorder %s74, %s75
      %p87 = scmp.eq.s32.totalorder %s23, 1
      %p88 = por %p86, %p87
      %p90 = scmp.ne.s32.totalorder %s75, %s89
      %p91 = scmp.eq.s32.totalorder %s23, 0
      %p92 = por %p90, %p91
      %s94 = sadd.s32 %s93, 1
      %p97 = scmp.eq.s32.totalorder %s17, 1
      %p98 = scmp.ne.s32.totalorder %s93, %s95
      %p99 = scmp.eq.s32.totalorder %s17, 0
      %p100 = por %p98, %p99
      %p101 = scmp.ne.s32.totalorder %s93, %s95
      %p102 = scmp.eq.s32.totalorder %s22, 1
      %p103 = por %p101, %p102
      %p104 = scmp.ne.s32.totalorder %s95, %s96
      %p105 = scmp.eq.s32.totalorder %s22, 0
      %p106 = por %p104, %p105
      %p107 = scmp.ne.s32.totalorder %s95, %s96
      %p108 = scmp.eq.s32.totalorder %s23, 1
      %p109 = por %p107, %p108
      %p111 = scmp.ne.s32.totalorder %s96, %s110
      %p112 = scmp.eq.s32.totalorder %s23, 0
      %p113 = por %p111, %p112
      %s114 = ssub.s32 %s17, %s24
      %p115 = scmp.eq.s32.totalorder %s114, 0
      %s117 = sadd.s32 %s116, 1
      %s118 = scalar_select %p115, %s116, %s117
      %p121 = pneg %p115
      %p122 = scmp.eq.s32.totalorder %s17, 1
      %p123 = por %p121, %p122
      %p124 = scmp.ne.s32.totalorder %s116, %s119
      %p125 = scmp.eq.s32.totalorder %s17, 0
      %p126 = por %p124, %p125
      %p127 = scmp.ne.s32.totalorder %s116, %s119
      %p128 = scmp.eq.s32.totalorder %s22, 1
      %p129 = por %p127, %p128
      %p130 = scmp.ne.s32.totalorder %s119, %s120
      %p131 = scmp.eq.s32.totalorder %s22, 0
      %p132 = por %p130, %p131
      %p133 = scmp.ne.s32.totalorder %s119, %s120
      %p134 = scmp.eq.s32.totalorder %s23, 1
      %p135 = por %p133, %p134
      %p137 = scmp.ne.s32.totalorder %s120, %s136
      %p138 = scmp.eq.s32.totalorder %s23, 0
      %p139 = por %p137, %p138
      %p140 = scmp.le.s32.totalorder 1, %s17
      %p141 = scmp.lt.s32.totalorder %s17, 3
      %p142 = pnand %p140, %p141
      %p143 = pneg %p142
      // Predicated region
      $region9: #{tpu_custom_call.1} parent=5 // pred_check
        _
      $region10: #{tpu_custom_call.1} parent=5 // pred_check_branch
        %145 = sbr.rel (%p142) target = $region12
      $region11: #{tpu_custom_call.1} parent=5 // pred_region
        %s146 = ssub.s32 %s17, 1
        // Predicated region
        $region13: #{tpu_custom_call.1} parent=11 // pred_check
          %p147 = pneg %p64
        $region14: #{tpu_custom_call.1} parent=11 // pred_check_branch
          %149 = sbr.rel (%p147) target = $region16
        $region15: #{tpu_custom_call.1} parent=11 // pred_region
          %151 = vsyncadd [#allocation7], 0
          %s152 = sshll.u32 %s1, 4
          %s153 = int_to_ptr.hbm [resolvable:$true] %s152
          %s154 = sshll.u32 [#allocation6], 4
          %s155 = int_to_ptr.vmem [resolvable:$true] %s154
          %160 = dma.hbm_to_vmem [thread:$0]  %s153, 6144, %s155, [#allocation7], 1536, 1536, 96
        $region16: #{tpu_custom_call.1} parent=11 // pred_fallthru
          _
        // Predicated region
        $region17: #{tpu_custom_call.1} parent=11 // pred_check
          %p161 = pneg %p85
        $region18: #{tpu_custom_call.1} parent=11 // pred_check_branch
          %163 = sbr.rel (%p161) target = $region20
        $region19: #{tpu_custom_call.1} parent=11 // pred_region
          %165 = vsyncadd [#allocation7], 0
          %s166 = sshll.u32 %s2, 4
          %s167 = int_to_ptr.hbm [resolvable:$true] %s166
          %s168 = sshll.u32 [#allocation8], 4
          %s169 = int_to_ptr.vmem [resolvable:$true] %s168
          %174 = dma.hbm_to_vmem [thread:$0]  %s167, 512, %s169, [#allocation7], 128, 128, 8
        $region20: #{tpu_custom_call.1} parent=11 // pred_fallthru
          _
        // Predicated region
        $region21: #{tpu_custom_call.1} parent=11 // pred_check
          %p175 = pneg %p106
        $region22: #{tpu_custom_call.1} parent=11 // pred_check_branch
          %177 = sbr.rel (%p175) target = $region24
        $region23: #{tpu_custom_call.1} parent=11 // pred_region
          _
        $region24: #{tpu_custom_call.1} parent=11 // pred_fallthru
          _
      $region12: #{tpu_custom_call.1} parent=5 // pred_fallthru
        _
      %p178 = scmp.lt.s32.totalorder %s17, 2
      // Predicated region
      $region25: #{tpu_custom_call.1} parent=5 // pred_check
        %p179 = pneg %p178
      $region26: #{tpu_custom_call.1} parent=5 // pred_check_branch
        %181 = sbr.rel (%p179) target = $region28
      $region27: #{tpu_custom_call.1} parent=5 // pred_region
        // Predicated region
        $region29: #{tpu_custom_call.1} parent=27 // pred_check
          %p182 = pneg %p37
        $region30: #{tpu_custom_call.1} parent=27 // pred_check_branch
          %184 = sbr.rel (%p182) target = $region32
        $region31: #{tpu_custom_call.1} parent=27 // pred_region
          %s185 = sand.u32 %s27, 1
          %s186 = scalar_lea.sflag [#allocation4], %s185
          %s187 = sand.u32 %s27, 1
          %s188 = smul.addr %s187, 8
          %s189 = scalar_lea.vmem [#allocation3], %s188
          %191 = vsyncadd %s186, 0
          %s192 = smul.addr %s17, 8
          %s193 = scalar_lea.hbm %s0, %s192
          %s195 = sshll.u32 %s193, 4
          %s196 = int_to_ptr.hbm [resolvable:$true] %s195
          %s197 = sshll.u32 %s189, 4
          %s198 = int_to_ptr.vmem [resolvable:$true] %s197
          %200 = dma.hbm_to_vmem [thread:$0]  %s196, 128, %s198, %s186
        $region32: #{tpu_custom_call.1} parent=27 // pred_fallthru
          _
      $region28: #{tpu_custom_call.1} parent=5 // pred_fallthru
        _
      %p201 = scmp.le.s32.totalorder 1, %s17
      %p202 = scmp.lt.s32.totalorder %s17, 3
      %p203 = pnand %p201, %p202
      %p204 = pneg %p203
      // Predicated region
      $region33: #{tpu_custom_call.1} parent=5 // pred_check
        _
      $region34: #{tpu_custom_call.1} parent=5 // pred_check_branch
        %206 = sbr.rel (%p203) target = $region36
      $region35: #{tpu_custom_call.1} parent=5 // pred_region
        %s207 = ssub.s32 %s17, 1
        %s208 = sand.u32 %s30, 1
        %s209 = scalar_lea.sflag [#allocation4], %s208
        %s210 = sand.u32 %s30, 1
        %s211 = smul.addr %s210, 8
        %s212 = scalar_lea.vmem [#allocation3], %s211
        // Predicated region
        $region37: #{tpu_custom_call.1} parent=35 // pred_check
          %p213 = pneg %p43
        $region38: #{tpu_custom_call.1} parent=35 // pred_check_branch
          %215 = sbr.rel (%p213) target = $region40
        $region39: #{tpu_custom_call.1} parent=35 // pred_region
          %217 = dma.done %s209, 128
        $region40: #{tpu_custom_call.1} parent=35 // pred_fallthru
          _
        // Predicated region
        $region41: #{tpu_custom_call.1} parent=35 // pred_check
          %p218 = pneg %p64
        $region42: #{tpu_custom_call.1} parent=35 // pred_check_branch
          %220 = sbr.rel (%p218) target = $region44
        $region43: #{tpu_custom_call.1} parent=35 // pred_region
          %222 = dma.done [#allocation7], 6144
        $region44: #{tpu_custom_call.1} parent=35 // pred_fallthru
          _
        // Predicated region
        $region45: #{tpu_custom_call.1} parent=35 // pred_check
          %p223 = pneg %p85
        $region46: #{tpu_custom_call.1} parent=35 // pred_check_branch
          %225 = sbr.rel (%p223) target = $region48
        $region47: #{tpu_custom_call.1} parent=35 // pred_region
          %227 = dma.done [#allocation7], 512
        $region48: #{tpu_custom_call.1} parent=35 // pred_fallthru
          _
        %s228 = sand.u32 %s30, 1
        %s229 = scalar_lea.sflag [#allocation4], %s228
        %s230 = sand.u32 %s30, 1
        %s231 = smul.addr %s230, 8
        %s232 = scalar_lea.vmem [#allocation3], %s231
        %p233 = pneg %p43
        %p234 = pneg %p40
        %p235 = pneg %p64
        %p236 = pneg %p61
        %p237 = pneg %p85
        %p238 = pneg %p82
        %p239 = pneg %p106
        %p240 = pneg %p103
        %p241 = pneg %p132
        %p242 = pneg %p129
        %s243 = sand.u32 %s119, 1
        %s244 = scalar_lea.sflag [#allocation5], %s243
        %s245 = sand.u32 %s119, 1
        %s246 = smul.addr %s245, 8
        %s247 = scalar_lea.vmem [#allocation9], %s246
        %v248 = vld [vmem:[%s212] sm:$0xff]
        %v249 = vld [vmem:[#allocation6] sm:$0xff]
        %v250 = vld [vmem:[#allocation6 + $0x8] sm:$0xff]
        %v251 = vld [vmem:[#allocation6 + $0x10] sm:$0xff]
        %v252 = vld [vmem:[#allocation6 + $0x18] sm:$0xff]
        %v253 = vld [vmem:[#allocation6 + $0x20] sm:$0xff]
        %v254 = vld [vmem:[#allocation6 + $0x28] sm:$0xff]
        %v255 = vld [vmem:[#allocation6 + $0x30] sm:$0xff]
        %v256 = vld [vmem:[#allocation6 + $0x38] sm:$0xff]
        %v257 = vld [vmem:[#allocation6 + $0x40] sm:$0xff]
        %v258 = vld [vmem:[#allocation6 + $0x48] sm:$0xff]
        %v259 = vld [vmem:[#allocation6 + $0x50] sm:$0xff]
        %v260 = vld [vmem:[#allocation6 + $0x58] sm:$0xff]
        %v261 = vld [vmem:[#allocation6 + $0x60] sm:$0xff]
        %v262 = vld [vmem:[#allocation6 + $0x68] sm:$0xff]
        %v263 = vld [vmem:[#allocation6 + $0x70] sm:$0xff]
        %v264 = vld [vmem:[#allocation6 + $0x78] sm:$0xff]
        %v265 = vld [vmem:[#allocation6 + $0x80] sm:$0xff]
        %v266 = vld [vmem:[#allocation6 + $0x88] sm:$0xff]
        %v267 = vld [vmem:[#allocation6 + $0x90] sm:$0xff]
        %v268 = vld [vmem:[#allocation6 + $0x98] sm:$0xff]
        %v269 = vld [vmem:[#allocation6 + $0xa0] sm:$0xff]
        %v270 = vld [vmem:[#allocation6 + $0xa8] sm:$0xff]
        %v271 = vld [vmem:[#allocation6 + $0xb0] sm:$0xff]
        %v272 = vld [vmem:[#allocation6 + $0xb8] sm:$0xff]
        %v273 = vld [vmem:[#allocation6 + $0xc0] sm:$0xff]
        %v274 = vld [vmem:[#allocation6 + $0xc8] sm:$0xff]
        %v275 = vld [vmem:[#allocation6 + $0xd0] sm:$0xff]
        %v276 = vld [vmem:[#allocation6 + $0xd8] sm:$0xff]
        %v277 = vld [vmem:[#allocation6 + $0xe0] sm:$0xff]
        %v278 = vld [vmem:[#allocation6 + $0xe8] sm:$0xff]
        %v279 = vld [vmem:[#allocation6 + $0xf0] sm:$0xff]
        %v280 = vld [vmem:[#allocation6 + $0xf8] sm:$0xff]
        %v281 = vld [vmem:[#allocation6 + $0x100] sm:$0xff]
        %v282 = vld [vmem:[#allocation6 + $0x108] sm:$0xff]
        %v283 = vld [vmem:[#allocation6 + $0x110] sm:$0xff]
        %v284 = vld [vmem:[#allocation6 + $0x118] sm:$0xff]
        %v285 = vld [vmem:[#allocation6 + $0x120] sm:$0xff]
        %v286 = vld [vmem:[#allocation6 + $0x128] sm:$0xff]
        %v287 = vld [vmem:[#allocation6 + $0x130] sm:$0xff]
        %v288 = vld [vmem:[#allocation6 + $0x138] sm:$0xff]
        %v289 = vld [vmem:[#allocation6 + $0x140] sm:$0xff]
        %v290 = vld [vmem:[#allocation6 + $0x148] sm:$0xff]
        %v291 = vld [vmem:[#allocation6 + $0x150] sm:$0xff]
        %v292 = vld [vmem:[#allocation6 + $0x158] sm:$0xff]
        %v293 = vld [vmem:[#allocation6 + $0x160] sm:$0xff]
        %v294 = vld [vmem:[#allocation6 + $0x168] sm:$0xff]
        %v295 = vld [vmem:[#allocation6 + $0x170] sm:$0xff]
        %v296 = vld [vmem:[#allocation6 + $0x178] sm:$0xff]
        %vm297 = vcmask 261120
        %v299 = vsel %vm297, %v248, 0
        %301 = vmatpush.msra.mxu0 0.0
        %302 = vmatpush.msra.mxu0 0.0
        %303 = vmatpush.msra.mxu0 0.0
        %304 = vmatpush.msra.mxu0 0.0
        %305 = vmatpush.msra.mxu0 0.0
        %306 = vmatpush.msra.mxu0 0.0
        %307 = vmatpush.msra.mxu0 0.0
        %308 = vmatpush.msra.mxu0 0.0
        %309 = vmatpush.msra.mxu0 0.0
        %310 = vmatpush.msra.mxu0 0.0
        %311 = vmatpush.msra.mxu0 0.0
        %312 = vmatpush.msra.mxu0 0.0
        %313 = vmatpush.msra.mxu0 %v285
        %314 = vmatpush.msra.mxu0 %v273
        %315 = vmatpush.msra.mxu0 %v261
        %316 = vmatpush.msra.mxu0 %v249
        %317 = vmatmul.f32.gmra.mxu0 %v299
        %v318 = vpop.f32.mrf.mxu0
        %v319 = vadd.f32 0.0, %v318
        %320 = vdwg.mxu0
        %321 = vmatpush.msra.mxu0 0.0
        %322 = vmatpush.msra.mxu0 0.0
        %323 = vmatpush.msra.mxu0 0.0
        %324 = vmatpush.msra.mxu0 0.0
        %325 = vmatpush.msra.mxu0 0.0
        %326 = vmatpush.msra.mxu0 0.0
        %327 = vmatpush.msra.mxu0 0.0
        %328 = vmatpush.msra.mxu0 0.0
        %329 = vmatpush.msra.mxu0 0.0
        %330 = vmatpush.msra.mxu0 0.0
        %331 = vmatpush.msra.mxu0 0.0
        %332 = vmatpush.msra.mxu0 0.0
        %333 = vmatpush.msra.mxu0 %v286
        %334 = vmatpush.msra.mxu0 %v274
        %335 = vmatpush.msra.mxu0 %v262
        %336 = vmatpush.msra.mxu0 %v250
        %337 = vmatmul.f32.gmra.mxu0 %v299
        %v338 = vpop.f32.mrf.mxu0
        %v339 = vadd.f32 0.0, %v338
        %340 = vdwg.mxu0
        %341 = vmatpush.msra.mxu0 0.0
        %342 = vmatpush.msra.mxu0 0.0
        %343 = vmatpush.msra.mxu0 0.0
        %344 = vmatpush.msra.mxu0 0.0
        %345 = vmatpush.msra.mxu0 0.0
        %346 = vmatpush.msra.mxu0 0.0
        %347 = vmatpush.msra.mxu0 0.0
        %348 = vmatpush.msra.mxu0 0.0
        %349 = vmatpush.msra.mxu0 0.0
        %350 = vmatpush.msra.mxu0 0.0
        %351 = vmatpush.msra.mxu0 0.0
        %352 = vmatpush.msra.mxu0 0.0
        %353 = vmatpush.msra.mxu0 %v287
        %354 = vmatpush.msra.mxu0 %v275
        %355 = vmatpush.msra.mxu0 %v263
        %356 = vmatpush.msra.mxu0 %v251
        %357 = vmatmul.f32.gmra.mxu0 %v299
        %v358 = vpop.f32.mrf.mxu0
        %v359 = vadd.f32 0.0, %v358
        %360 = vdwg.mxu0
        %361 = vmatpush.msra.mxu0 0.0
        %362 = vmatpush.msra.mxu0 0.0
        %363 = vmatpush.msra.mxu0 0.0
        %364 = vmatpush.msra.mxu0 0.0
        %365 = vmatpush.msra.mxu0 0.0
        %366 = vmatpush.msra.mxu0 0.0
        %367 = vmatpush.msra.mxu0 0.0
        %368 = vmatpush.msra.mxu0 0.0
        %369 = vmatpush.msra.mxu0 0.0
        %370 = vmatpush.msra.mxu0 0.0
        %371 = vmatpush.msra.mxu0 0.0
        %372 = vmatpush.msra.mxu0 0.0
        %373 = vmatpush.msra.mxu0 %v288
        %374 = vmatpush.msra.mxu0 %v276
        %375 = vmatpush.msra.mxu0 %v264
        %376 = vmatpush.msra.mxu0 %v252
        %377 = vmatmul.f32.gmra.mxu0 %v299
        %v378 = vpop.f32.mrf.mxu0
        %v379 = vadd.f32 0.0, %v378
        %380 = vdwg.mxu0
        %381 = vmatpush.msra.mxu0 0.0
        %382 = vmatpush.msra.mxu0 0.0
        %383 = vmatpush.msra.mxu0 0.0
        %384 = vmatpush.msra.mxu0 0.0
        %385 = vmatpush.msra.mxu0 0.0
        %386 = vmatpush.msra.mxu0 0.0
        %387 = vmatpush.msra.mxu0 0.0
        %388 = vmatpush.msra.mxu0 0.0
        %389 = vmatpush.msra.mxu0 0.0
        %390 = vmatpush.msra.mxu0 0.0
        %391 = vmatpush.msra.mxu0 0.0
        %392 = vmatpush.msra.mxu0 0.0
        %393 = vmatpush.msra.mxu0 %v289
        %394 = vmatpush.msra.mxu0 %v277
        %395 = vmatpush.msra.mxu0 %v265
        %396 = vmatpush.msra.mxu0 %v253
        %397 = vmatmul.f32.gmra.mxu0 %v299
        %v398 = vpop.f32.mrf.mxu0
        %v399 = vadd.f32 0.0, %v398
        %400 = vdwg.mxu0
        %401 = vmatpush.msra.mxu0 0.0
        %402 = vmatpush.msra.mxu0 0.0
        %403 = vmatpush.msra.mxu0 0.0
        %404 = vmatpush.msra.mxu0 0.0
        %405 = vmatpush.msra.mxu0 0.0
        %406 = vmatpush.msra.mxu0 0.0
        %407 = vmatpush.msra.mxu0 0.0
        %408 = vmatpush.msra.mxu0 0.0
        %409 = vmatpush.msra.mxu0 0.0
        %410 = vmatpush.msra.mxu0 0.0
        %411 = vmatpush.msra.mxu0 0.0
        %412 = vmatpush.msra.mxu0 0.0
        %413 = vmatpush.msra.mxu0 %v290
        %414 = vmatpush.msra.mxu0 %v278
        %415 = vmatpush.msra.mxu0 %v266
        %416 = vmatpush.msra.mxu0 %v254
        %417 = vmatmul.f32.gmra.mxu0 %v299
        %v418 = vpop.f32.mrf.mxu0
        %v419 = vadd.f32 0.0, %v418
        %420 = vdwg.mxu0
        %421 = vmatpush.msra.mxu0 0.0
        %422 = vmatpush.msra.mxu0 0.0
        %423 = vmatpush.msra.mxu0 0.0
        %424 = vmatpush.msra.mxu0 0.0
        %425 = vmatpush.msra.mxu0 0.0
        %426 = vmatpush.msra.mxu0 0.0
        %427 = vmatpush.msra.mxu0 0.0
        %428 = vmatpush.msra.mxu0 0.0
        %429 = vmatpush.msra.mxu0 0.0
        %430 = vmatpush.msra.mxu0 0.0
        %431 = vmatpush.msra.mxu0 0.0
        %432 = vmatpush.msra.mxu0 0.0
        %433 = vmatpush.msra.mxu0 %v291
        %434 = vmatpush.msra.mxu0 %v279
        %435 = vmatpush.msra.mxu0 %v267
        %436 = vmatpush.msra.mxu0 %v255
        %437 = vmatmul.f32.gmra.mxu0 %v299
        %v438 = vpop.f32.mrf.mxu0
        %v439 = vadd.f32 0.0, %v438
        %440 = vdwg.mxu0
        %441 = vmatpush.msra.mxu0 0.0
        %442 = vmatpush.msra.mxu0 0.0
        %443 = vmatpush.msra.mxu0 0.0
        %444 = vmatpush.msra.mxu0 0.0
        %445 = vmatpush.msra.mxu0 0.0
        %446 = vmatpush.msra.mxu0 0.0
        %447 = vmatpush.msra.mxu0 0.0
        %448 = vmatpush.msra.mxu0 0.0
        %449 = vmatpush.msra.mxu0 0.0
        %450 = vmatpush.msra.mxu0 0.0
        %451 = vmatpush.msra.mxu0 0.0
        %452 = vmatpush.msra.mxu0 0.0
        %453 = vmatpush.msra.mxu0 %v292
        %454 = vmatpush.msra.mxu0 %v280
        %455 = vmatpush.msra.mxu0 %v268
        %456 = vmatpush.msra.mxu0 %v256
        %457 = vmatmul.f32.gmra.mxu0 %v299
        %v458 = vpop.f32.mrf.mxu0
        %v459 = vadd.f32 0.0, %v458
        %460 = vdwg.mxu0
        %461 = vmatpush.msra.mxu0 0.0
        %462 = vmatpush.msra.mxu0 0.0
        %463 = vmatpush.msra.mxu0 0.0
        %464 = vmatpush.msra.mxu0 0.0
        %465 = vmatpush.msra.mxu0 0.0
        %466 = vmatpush.msra.mxu0 0.0
        %467 = vmatpush.msra.mxu0 0.0
        %468 = vmatpush.msra.mxu0 0.0
        %469 = vmatpush.msra.mxu0 0.0
        %470 = vmatpush.msra.mxu0 0.0
        %471 = vmatpush.msra.mxu0 0.0
        %472 = vmatpush.msra.mxu0 0.0
        %473 = vmatpush.msra.mxu0 %v293
        %474 = vmatpush.msra.mxu0 %v281
        %475 = vmatpush.msra.mxu0 %v269
        %476 = vmatpush.msra.mxu0 %v257
        %477 = vmatmul.f32.gmra.mxu0 %v299
        %v478 = vpop.f32.mrf.mxu0
        %v479 = vadd.f32 0.0, %v478
        %480 = vdwg.mxu0
        %481 = vmatpush.msra.mxu0 0.0
        %482 = vmatpush.msra.mxu0 0.0
        %483 = vmatpush.msra.mxu0 0.0
        %484 = vmatpush.msra.mxu0 0.0
        %485 = vmatpush.msra.mxu0 0.0
        %486 = vmatpush.msra.mxu0 0.0
        %487 = vmatpush.msra.mxu0 0.0
        %488 = vmatpush.msra.mxu0 0.0
        %489 = vmatpush.msra.mxu0 0.0
        %490 = vmatpush.msra.mxu0 0.0
        %491 = vmatpush.msra.mxu0 0.0
        %492 = vmatpush.msra.mxu0 0.0
        %493 = vmatpush.msra.mxu0 %v294
        %494 = vmatpush.msra.mxu0 %v282
        %495 = vmatpush.msra.mxu0 %v270
        %496 = vmatpush.msra.mxu0 %v258
        %497 = vmatmul.f32.gmra.mxu0 %v299
        %v498 = vpop.f32.mrf.mxu0
        %v499 = vadd.f32 0.0, %v498
        %500 = vdwg.mxu0
        %501 = vmatpush.msra.mxu0 0.0
        %502 = vmatpush.msra.mxu0 0.0
        %503 = vmatpush.msra.mxu0 0.0
        %504 = vmatpush.msra.mxu0 0.0
        %505 = vmatpush.msra.mxu0 0.0
        %506 = vmatpush.msra.mxu0 0.0
        %507 = vmatpush.msra.mxu0 0.0
        %508 = vmatpush.msra.mxu0 0.0
        %509 = vmatpush.msra.mxu0 0.0
        %510 = vmatpush.msra.mxu0 0.0
        %511 = vmatpush.msra.mxu0 0.0
        %512 = vmatpush.msra.mxu0 0.0
        %513 = vmatpush.msra.mxu0 %v295
        %514 = vmatpush.msra.mxu0 %v283
        %515 = vmatpush.msra.mxu0 %v271
        %516 = vmatpush.msra.mxu0 %v259
        %517 = vmatmul.f32.gmra.mxu0 %v299
        %v518 = vpop.f32.mrf.mxu0
        %v519 = vadd.f32 0.0, %v518
        %520 = vdwg.mxu0
        %521 = vmatpush.msra.mxu0 0.0
        %522 = vmatpush.msra.mxu0 0.0
        %523 = vmatpush.msra.mxu0 0.0
        %524 = vmatpush.msra.mxu0 0.0
        %525 = vmatpush.msra.mxu0 0.0
        %526 = vmatpush.msra.mxu0 0.0
        %527 = vmatpush.msra.mxu0 0.0
        %528 = vmatpush.msra.mxu0 0.0
        %529 = vmatpush.msra.mxu0 0.0
        %530 = vmatpush.msra.mxu0 0.0
        %531 = vmatpush.msra.mxu0 0.0
        %532 = vmatpush.msra.mxu0 0.0
        %533 = vmatpush.msra.mxu0 %v296
        %534 = vmatpush.msra.mxu0 %v284
        %535 = vmatpush.msra.mxu0 %v272
        %536 = vmatpush.msra.mxu0 %v260
        %537 = vmatmul.f32.gmra.mxu0 %v299
        %v538 = vpop.f32.mrf.mxu0
        %v539 = vadd.f32 0.0, %v538
        %540 = vdwg.mxu0
        %541 = vmatpush.xpose.msra.mxu0 0.0
        %542 = vmatpush.xpose.msra.mxu0 0.0
        %543 = vmatpush.xpose.msra.mxu0 0.0
        %544 = vmatpush.xpose.msra.mxu0 0.0
        %545 = vmatpush.xpose.msra.mxu0 0.0
        %546 = vmatpush.xpose.msra.mxu0 0.0
        %547 = vmatpush.xpose.msra.mxu0 0.0
        %548 = vmatpush.xpose.msra.mxu0 0.0
        %549 = vmatpush.xpose.msra.mxu0 0.0
        %550 = vmatpush.xpose.msra.mxu0 0.0
        %551 = vmatpush.xpose.msra.mxu0 0.0
        %552 = vmatpush.xpose.msra.mxu0 0.0
        %553 = vmatpush.xpose.msra.mxu0 0.0
        %554 = vmatpush.xpose.msra.mxu0 0.0
        %555 = vmatpush.xpose.msra.mxu0 0.0
        %556 = vmatpush.xpose.msra.mxu0 %v399
        %557 = vmatmul.f32.gmra.mxu0 %v319
        %v558 = vpop.f32.mrf.mxu0
        %v559 = vadd.f32 0.0, %v558
        %560 = vdwg.mxu0
        %vm561 = vcmask 64512
        %v562 = vsel %vm561, %v559, -inf
        %563 = vmax.xlane.f32.xlu0 %v562
        %v564 = vpop.xlane.xlu0 %563
        %v565 = vsub.f32 %v559, %v564
        %v566 = vmul.f32 %v565, 1.442695
        %v567 = vpow.pop %v566
        %v568 = vsel %vm561, %v567, 0.0
        %569 = vadd.xlane.f32.xlu0 %v568
        %v570 = vpop.xlane.xlu0 %569
        %v571 = vrcp.pop %v570
        %v572 = vmul.f32 %v567, %v571
        %v574 = vsel %vm561, %v572, 0
        %576 = vmatpush.msra.mxu0 0.0
        %577 = vmatpush.msra.mxu0 0.0
        %578 = vmatpush.msra.mxu0 0.0
        %579 = vmatpush.msra.mxu0 0.0
        %580 = vmatpush.msra.mxu0 0.0
        %581 = vmatpush.msra.mxu0 0.0
        %582 = vmatpush.msra.mxu0 0.0
        %583 = vmatpush.msra.mxu0 0.0
        %584 = vmatpush.msra.mxu0 0.0
        %585 = vmatpush.msra.mxu0 0.0
        %586 = vmatpush.msra.mxu0 0.0
        %587 = vmatpush.msra.mxu0 0.0
        %588 = vmatpush.msra.mxu0 0.0
        %589 = vmatpush.msra.mxu0 0.0
        %590 = vmatpush.msra.mxu0 0.0
        %591 = vmatpush.msra.mxu0 %v479
        %592 = vmatmul.f32.gmra.mxu0 %v574
        %v593 = vpop.f32.mrf.mxu0
        %v594 = vadd.f32 0.0, %v593
        %595 = vdwg.mxu0
        %596 = vst.msk [vmem:[#allocation2] sm:$0xff] %vm561, %v594
        %597 = vmatpush.xpose.msra.mxu0 0.0
        %598 = vmatpush.xpose.msra.mxu0 0.0
        %599 = vmatpush.xpose.msra.mxu0 0.0
        %600 = vmatpush.xpose.msra.mxu0 0.0
        %601 = vmatpush.xpose.msra.mxu0 0.0
        %602 = vmatpush.xpose.msra.mxu0 0.0
        %603 = vmatpush.xpose.msra.mxu0 0.0
        %604 = vmatpush.xpose.msra.mxu0 0.0
        %605 = vmatpush.xpose.msra.mxu0 0.0
        %606 = vmatpush.xpose.msra.mxu0 0.0
        %607 = vmatpush.xpose.msra.mxu0 0.0
        %608 = vmatpush.xpose.msra.mxu0 0.0
        %609 = vmatpush.xpose.msra.mxu0 0.0
        %610 = vmatpush.xpose.msra.mxu0 0.0
        %611 = vmatpush.xpose.msra.mxu0 0.0
        %612 = vmatpush.xpose.msra.mxu0 %v419
        %613 = vmatmul.f32.gmra.mxu0 %v339
        %v614 = vpop.f32.mrf.mxu0
        %v615 = vadd.f32 0.0, %v614
        %616 = vdwg.mxu0
        %v617 = vsel %vm561, %v615, -inf
        %618 = vmax.xlane.f32.xlu0 %v617
        %v619 = vpop.xlane.xlu0 %618
        %v620 = vsub.f32 %v615, %v619
        %v621 = vmul.f32 %v620, 1.442695
        %v622 = vpow.pop %v621
        %v623 = vsel %vm561, %v622, 0.0
        %624 = vadd.xlane.f32.xlu0 %v623
        %v625 = vpop.xlane.xlu0 %624
        %v626 = vrcp.pop %v625
        %v627 = vmul.f32 %v622, %v626
        %v629 = vsel %vm561, %v627, 0
        %631 = vmatpush.msra.mxu0 0.0
        %632 = vmatpush.msra.mxu0 0.0
        %633 = vmatpush.msra.mxu0 0.0
        %634 = vmatpush.msra.mxu0 0.0
        %635 = vmatpush.msra.mxu0 0.0
        %636 = vmatpush.msra.mxu0 0.0
        %637 = vmatpush.msra.mxu0 0.0
        %638 = vmatpush.msra.mxu0 0.0
        %639 = vmatpush.msra.mxu0 0.0
        %640 = vmatpush.msra.mxu0 0.0
        %641 = vmatpush.msra.mxu0 0.0
        %642 = vmatpush.msra.mxu0 0.0
        %643 = vmatpush.msra.mxu0 0.0
        %644 = vmatpush.msra.mxu0 0.0
        %645 = vmatpush.msra.mxu0 0.0
        %646 = vmatpush.msra.mxu0 %v499
        %647 = vmatmul.f32.gmra.mxu0 %v629
        %v648 = vpop.f32.mrf.mxu0
        %v649 = vadd.f32 0.0, %v648
        %650 = vdwg.mxu0
        %652 = vrot.lane.b32.xlu0 %v649, 8
        %v653 = vpop.permute.xlu0 %652
        %vm655 = vcmask 130112
        %656 = vst.msk [vmem:[#allocation2] sm:$0xff] %vm655, %v653
        %657 = vmatpush.xpose.msra.mxu0 0.0
        %658 = vmatpush.xpose.msra.mxu0 0.0
        %659 = vmatpush.xpose.msra.mxu0 0.0
        %660 = vmatpush.xpose.msra.mxu0 0.0
        %661 = vmatpush.xpose.msra.mxu0 0.0
        %662 = vmatpush.xpose.msra.mxu0 0.0
        %663 = vmatpush.xpose.msra.mxu0 0.0
        %664 = vmatpush.xpose.msra.mxu0 0.0
        %665 = vmatpush.xpose.msra.mxu0 0.0
        %666 = vmatpush.xpose.msra.mxu0 0.0
        %667 = vmatpush.xpose.msra.mxu0 0.0
        %668 = vmatpush.xpose.msra.mxu0 0.0
        %669 = vmatpush.xpose.msra.mxu0 0.0
        %670 = vmatpush.xpose.msra.mxu0 0.0
        %671 = vmatpush.xpose.msra.mxu0 0.0
        %672 = vmatpush.xpose.msra.mxu0 %v439
        %673 = vmatmul.f32.gmra.mxu0 %v359
        %v674 = vpop.f32.mrf.mxu0
        %v675 = vadd.f32 0.0, %v674
        %676 = vdwg.mxu0
        %v677 = vsel %vm561, %v675, -inf
        %678 = vmax.xlane.f32.xlu0 %v677
        %v679 = vpop.xlane.xlu0 %678
        %v680 = vsub.f32 %v675, %v679
        %v681 = vmul.f32 %v680, 1.442695
        %v682 = vpow.pop %v681
        %v683 = vsel %vm561, %v682, 0.0
        %684 = vadd.xlane.f32.xlu0 %v683
        %v685 = vpop.xlane.xlu0 %684
        %v686 = vrcp.pop %v685
        %v687 = vmul.f32 %v682, %v686
        %v689 = vsel %vm561, %v687, 0
        %691 = vmatpush.msra.mxu0 0.0
        %692 = vmatpush.msra.mxu0 0.0
        %693 = vmatpush.msra.mxu0 0.0
        %694 = vmatpush.msra.mxu0 0.0
        %695 = vmatpush.msra.mxu0 0.0
        %696 = vmatpush.msra.mxu0 0.0
        %697 = vmatpush.msra.mxu0 0.0
        %698 = vmatpush.msra.mxu0 0.0
        %699 = vmatpush.msra.mxu0 0.0
        %700 = vmatpush.msra.mxu0 0.0
        %701 = vmatpush.msra.mxu0 0.0
        %702 = vmatpush.msra.mxu0 0.0
        %703 = vmatpush.msra.mxu0 0.0
        %704 = vmatpush.msra.mxu0 0.0
        %705 = vmatpush.msra.mxu0 0.0
        %706 = vmatpush.msra.mxu0 %v519
        %707 = vmatmul.f32.gmra.mxu0 %v689
        %v708 = vpop.f32.mrf.mxu0
        %v709 = vadd.f32 0.0, %v708
        %710 = vdwg.mxu0
        %712 = vrot.lane.b32.xlu0 %v709, 16
        %v713 = vpop.permute.xlu0 %712
        %vm715 = vcmask 195712
        %716 = vst.msk [vmem:[#allocation2] sm:$0xff] %vm715, %v713
        %717 = vmatpush.xpose.msra.mxu0 0.0
        %718 = vmatpush.xpose.msra.mxu0 0.0
        %719 = vmatpush.xpose.msra.mxu0 0.0
        %720 = vmatpush.xpose.msra.mxu0 0.0
        %721 = vmatpush.xpose.msra.mxu0 0.0
        %722 = vmatpush.xpose.msra.mxu0 0.0
        %723 = vmatpush.xpose.msra.mxu0 0.0
        %724 = vmatpush.xpose.msra.mxu0 0.0
        %725 = vmatpush.xpose.msra.mxu0 0.0
        %726 = vmatpush.xpose.msra.mxu0 0.0
        %727 = vmatpush.xpose.msra.mxu0 0.0
        %728 = vmatpush.xpose.msra.mxu0 0.0
        %729 = vmatpush.xpose.msra.mxu0 0.0
        %730 = vmatpush.xpose.msra.mxu0 0.0
        %731 = vmatpush.xpose.msra.mxu0 0.0
        %732 = vmatpush.xpose.msra.mxu0 %v459
        %733 = vmatmul.f32.gmra.mxu0 %v379
        %v734 = vpop.f32.mrf.mxu0
        %v735 = vadd.f32 0.0, %v734
        %736 = vdwg.mxu0
        %v737 = vsel %vm561, %v735, -inf
        %738 = vmax.xlane.f32.xlu0 %v737
        %v739 = vpop.xlane.xlu0 %738
        %v740 = vsub.f32 %v735, %v739
        %v741 = vmul.f32 %v740, 1.442695
        %v742 = vpow.pop %v741
        %v743 = vsel %vm561, %v742, 0.0
        %744 = vadd.xlane.f32.xlu0 %v743
        %v745 = vpop.xlane.xlu0 %744
        %v746 = vrcp.pop %v745
        %v747 = vmul.f32 %v742, %v746
        %v749 = vsel %vm561, %v747, 0
        %751 = vmatpush.msra.mxu0 0.0
        %752 = vmatpush.msra.mxu0 0.0
        %753 = vmatpush.msra.mxu0 0.0
        %754 = vmatpush.msra.mxu0 0.0
        %755 = vmatpush.msra.mxu0 0.0
        %756 = vmatpush.msra.mxu0 0.0
        %757 = vmatpush.msra.mxu0 0.0
        %758 = vmatpush.msra.mxu0 0.0
        %759 = vmatpush.msra.mxu0 0.0
        %760 = vmatpush.msra.mxu0 0.0
        %761 = vmatpush.msra.mxu0 0.0
        %762 = vmatpush.msra.mxu0 0.0
        %763 = vmatpush.msra.mxu0 0.0
        %764 = vmatpush.msra.mxu0 0.0
        %765 = vmatpush.msra.mxu0 0.0
        %766 = vmatpush.msra.mxu0 %v539
        %767 = vmatmul.f32.gmra.mxu0 %v749
        %v768 = vpop.f32.mrf.mxu0
        %v769 = vadd.f32 0.0, %v768
        %770 = vdwg.mxu0
        %772 = vrot.lane.b32.xlu0 %v769, 24
        %v773 = vpop.permute.xlu0 %772
        %vm775 = vcmask 261312
        %776 = vst.msk [vmem:[#allocation2] sm:$0xff] %vm775, %v773
        %v777 = vld [vmem:[#allocation2] sm:$0xff]
        %v778 = vld [vmem:[#allocation8] sm:$0xff]
        %v779 = vld [vmem:[#allocation8 + $0x8] sm:$0xff]
        %v780 = vld [vmem:[#allocation8 + $0x10] sm:$0xff]
        %v781 = vld [vmem:[#allocation8 + $0x18] sm:$0xff]
        %v782 = vld [vmem:[%s3] sm:$0x1]
        %v784 = vperm.slane %v782, 0
        %v787 = vsel %vm297, %v777, 0
        %789 = vmatpush.msra.mxu0 0.0
        %790 = vmatpush.msra.mxu0 0.0
        %791 = vmatpush.msra.mxu0 0.0
        %792 = vmatpush.msra.mxu0 0.0
        %793 = vmatpush.msra.mxu0 0.0
        %794 = vmatpush.msra.mxu0 0.0
        %795 = vmatpush.msra.mxu0 0.0
        %796 = vmatpush.msra.mxu0 0.0
        %797 = vmatpush.msra.mxu0 0.0
        %798 = vmatpush.msra.mxu0 0.0
        %799 = vmatpush.msra.mxu0 0.0
        %800 = vmatpush.msra.mxu0 0.0
        %801 = vmatpush.msra.mxu0 %v781
        %802 = vmatpush.msra.mxu0 %v780
        %803 = vmatpush.msra.mxu0 %v779
        %804 = vmatpush.msra.mxu0 %v778
        %805 = vmatmul.f32.gmra.mxu0 %v787
        %v806 = vpop.f32.mrf.mxu0
        %v807 = vadd.f32 %v784, %v806
        %808 = vdwg.mxu0
        %809 = vst.msk [vmem:[%s247] sm:$0xff] %vm297, %v807
        %s810 = sand.u32 %s119, 1
        %s811 = scalar_lea.sflag [#allocation5], %s810
        %s812 = sand.u32 %s119, 1
        %s813 = smul.addr %s812, 8
        %s814 = scalar_lea.vmem [#allocation9], %s813
        // Predicated region
        $region49: #{tpu_custom_call.1} parent=35 // pred_check
          %p815 = pneg %p129
        $region50: #{tpu_custom_call.1} parent=35 // pred_check_branch
          %817 = sbr.rel (%p815) target = $region52
        $region51: #{tpu_custom_call.1} parent=35 // pred_region
          %819 = vsyncadd %s811, 0
          %s820 = smul.addr %s22, 8
          %s821 = scalar_lea.hbm %s4, %s820
          %s823 = sshll.u32 %s814, 4
          %s824 = int_to_ptr.vmem [resolvable:$true] %s823
          %s825 = sshll.u32 %s821, 4
          %s826 = int_to_ptr.hbm [resolvable:$true] %s825
          %828 = dma.vmem_to_hbm [thread:$0]  %s824, 128, %s826, %s811
        $region52: #{tpu_custom_call.1} parent=35 // pred_fallthru
          _
      $region36: #{tpu_custom_call.1} parent=5 // pred_fallthru
        _
      %p829 = scmp.le.s32.totalorder 2, %s17
      // Predicated region
      $region53: #{tpu_custom_call.1} parent=5 // pred_check
        %p830 = pneg %p829
      $region54: #{tpu_custom_call.1} parent=5 // pred_check_branch
        %832 = sbr.rel (%p830) target = $region56
      $region55: #{tpu_custom_call.1} parent=5 // pred_region
        %s833 = ssub.s32 %s17, 2
        // Predicated region
        $region57: #{tpu_custom_call.1} parent=55 // pred_check
          %p834 = pneg %p135
        $region58: #{tpu_custom_call.1} parent=55 // pred_check_branch
          %836 = sbr.rel (%p834) target = $region60
        $region59: #{tpu_custom_call.1} parent=55 // pred_region
          %s837 = sand.u32 %s120, 1
          %s838 = scalar_lea.sflag [#allocation5], %s837
          %s839 = sand.u32 %s120, 1
          %s840 = smul.addr %s839, 8
          %s841 = scalar_lea.vmem [#allocation9], %s840
          %843 = dma.done %s838, 128
        $region60: #{tpu_custom_call.1} parent=55 // pred_fallthru
          _
      $region56: #{tpu_custom_call.1} parent=5 // pred_fallthru
        _
    $region6: #{tpu_custom_call.1} parent=1 // loop_footer
      %s21 = sadd.s32 1, %s17
    $region7: #{tpu_custom_call.1} parent=1 // loop_footer_branch
      %16 = sbr.rel target = $region3
    $region8: #{tpu_custom_call.1} parent=1 // loop_exit
      _
    %844 = vsyncpa [#allocation4], 1
    %s845 = scalar_lea.sflag [#allocation4], 1
    %846 = vsyncpa %s845, 1
    %847 = vsyncpa [#allocation7], 1
    %848 = vsyncpa [#allocation5], 1
    %s849 = scalar_lea.sflag [#allocation5], 1
    %850 = vsyncpa %s849, 1

</llo_original>
